<compile_context>
chip_gen: v7x
topology: tpu7x:2x2x1
jax: 0.10.0
libtpu: 0.0.40
codegen_flags: <defaults>
</compile_context>

<pallas_src>
import functools

import numpy as np

import jax
import jax.numpy as jnp
from jax.experimental import pallas as pl
from jax.experimental.pallas import tpu as pltpu


def _attention_pi_kernel(sig_ref, pi_ref, p_ref, x_ref, wf_ref, bf_ref, bo_ref,
                         out_ref, attn_ref, g_ref, *, heads, channels):
    C = channels

    # G = stack_h[(Wo_h @ Wh_h) @ x + Wo_h @ bh_h]   -> (H*C, T), f32.
    # x and the folded weights only change with the batch index, so compute G
    # once per batch element (mel-tile index 0) and keep it in VMEM scratch.
    # Relies on the mel-tile grid axis being "arbitrary" (sequential, in order).
    @pl.when(pl.program_id(1) == 0)
    def _():
        g_ref[...] = (
            jnp.dot(wf_ref[...], x_ref[0], preferred_element_type=jnp.float32)
            + bf_ref[...])

    # Base energies (sigma == 1):  e[m, t] = -(pi[m] - p[t])^2          (TM, T)
    # NOTE: pi is staged as a (TM, 1) column (lane-sparse but capped at
    # TM <= 256 -> <=128 KiB VMEM) to avoid an in-kernel lane->sublane relayout.
    pi = pi_ref[0]                                     # (TM, 1) f32
    p = p_ref[0]                                       # (1, T)  f32
    diff = pi - p                                      # (TM, T)
    e = -(diff * diff)                                 # (TM, T)

    # Hoisted row-max: sigma > 0 is a monotone per-head scale, so
    # max_t(sigma * e) == sigma * max_t(e); exp argument sigma*(e - m0) <= 0.
    m0 = jnp.max(e, axis=-1, keepdims=True)            # (TM, 1)
    d = e - m0                                          # (TM, T), <= 0

    tm = pi.shape[0]
    acc = jnp.zeros((C, tm), dtype=jnp.float32)

    for hd in range(heads):
        sig_h = sig_ref[hd]                             # SMEM scalar, in (0, 3]
        ex = jnp.exp(sig_h * d)                         # (TM, T)
        denom = jnp.sum(ex, axis=-1, keepdims=True)     # (TM, 1)
        # One reciprocal per row instead of a divide per element.
        # (pl.reciprocal(denom, approx=True) would push this onto the EUP at a
        #  ~1e-4-level accuracy cost; kept exact to match the reference.)
        a = ex * (1.0 / denom)                          # (TM, T)
        attn_ref[0, hd] = a.astype(attn_ref.dtype)

        # (C, T) x (TM, T) contracted over T -> (C, TM) on the MXU.
        g_h = g_ref[hd * C:(hd + 1) * C, :]             # (C, T) f32
        acc = acc + jax.lax.dot_general(
            g_h, a,
            dimension_numbers=(((1,), (1,)), ((), ())),
            preferred_element_type=jnp.float32)

    out_ref[0] = (acc + bo_ref[...]).astype(out_ref.dtype)


def attention_pi(pi, p, x_h, sigma, wh, bh, wo, bo, *, heads,
                 text_mask=None, mel_mask=None,
                 block_m=256, attn_dtype=jnp.float32):
    """Pallas forward of AttentionPI. Returns (out, attns, real_sigma)."""
    if text_mask is not None or mel_mask is not None:
        # TODO(synk): masked_fill(-inf) branch for text_mask / mel_mask.
        raise NotImplementedError("mask handling not implemented in Pallas kernel")

    B, M = pi.shape
    _, T = p.shape
    C = x_h.shape[1]
    two_c = 2 * C
    assert two_c % heads == 0
    D = two_c // heads

    real_sigma = jnp.clip(sigma, 1e-6, 3.0)

    # Fold linear_out into linear_hidden per head (parameter-only precompute):
    #   out = sum_h (Wo_h @ (Wh_h @ x + bh_h)) @ attn_h^T + bo
    #       = sum_h ((Wo_h @ Wh_h) @ x + Wo_h @ bh_h) @ attn_h^T + bo
    wh_h = wh.reshape(heads, D, C)                         # (H, D, C)
    wo_h = wo.reshape(C, heads, D).transpose(1, 0, 2)       # (H, C, D)
    bh_h = bh.reshape(heads, D)
    wfold = jnp.einsum('hcd,hdk->hck', wo_h, wh_h,
                       precision=jax.lax.Precision.HIGHEST)  # (H, C, C)
    bfold = jnp.einsum('hcd,hd->hc', wo_h, bh_h,
                       precision=jax.lax.Precision.HIGHEST)  # (H, C)
    wfold_flat = wfold.reshape(heads * C, C).astype(x_h.dtype)  # bf16 stays bf16
    bfold_flat = bfold.reshape(heads * C, 1).astype(jnp.float32)
    bo2 = bo.reshape(C, 1).astype(jnp.float32)

    # Mel tiling: bounds per-step VMEM (v7x: 64 MiB physical) and keeps the
    # `out` store lane-dense (128-multiple tiles) once M is large.
    if M <= block_m:
        m_pad = max(8, -(-M // 8) * 8)
        tm = m_pad
    else:
        m_pad = -(-M // block_m) * block_m
        tm = block_m
    n_mt = m_pad // tm

    pi_f = pi.astype(jnp.float32)
    if m_pad != M:
        pi_f = jnp.pad(pi_f, ((0, 0), (0, m_pad - M)))
    pi3 = pi_f.reshape(B, m_pad, 1)
    p3 = p.reshape(B, 1, T).astype(jnp.float32)
    sig1 = real_sigma.astype(jnp.float32).reshape(heads)

    out_dtype = x_h.dtype
    out_isz = np.dtype(out_dtype).itemsize
    attn_isz = np.dtype(attn_dtype).itemsize

    flops = int(B * (2 * heads * C * C * T          # folded-weight matmul
                     + 2 * heads * C * T * m_pad    # attn @ G contraction
                     + 6 * heads * m_pad * T))      # softmax elementwise
    transcendentals = int(B * heads * m_pad * T)
    bytes_accessed = int(
        pi3.size * 4 + p3.size * 4
        + x_h.size * x_h.dtype.itemsize
        + wfold_flat.size * wfold_flat.dtype.itemsize
        + bfold_flat.size * 4 + bo2.size * 4 + sig1.size * 4
        + B * C * m_pad * out_isz
        + B * heads * m_pad * T * attn_isz)

    kernel = functools.partial(_attention_pi_kernel, heads=heads, channels=C)
    out_p, attn_p = pl.pallas_call(
        kernel,
        out_shape=(jax.ShapeDtypeStruct((B, C, m_pad), out_dtype),
                   jax.ShapeDtypeStruct((B, heads, m_pad, T), attn_dtype)),
        grid_spec=pltpu.PrefetchScalarGridSpec(
            num_scalar_prefetch=0,
            grid=(B, n_mt),
            in_specs=[
                pl.BlockSpec(memory_space=pltpu.MemorySpace.SMEM),   # sigma (H,)
                pl.BlockSpec((1, tm, 1), lambda b, m: (b, m, 0)),    # pi
                pl.BlockSpec((1, 1, T), lambda b, m: (b, 0, 0)),     # p
                pl.BlockSpec((1, C, T), lambda b, m: (b, 0, 0)),     # x_h
                pl.BlockSpec((heads * C, C), lambda b, m: (0, 0)),   # folded W
                pl.BlockSpec((heads * C, 1), lambda b, m: (0, 0)),   # folded b
                pl.BlockSpec((C, 1), lambda b, m: (0, 0)),           # b_out
            ],
            out_specs=[
                pl.BlockSpec((1, C, tm), lambda b, m: (b, 0, m)),
                pl.BlockSpec((1, heads, tm, T), lambda b, m: (b, 0, m, 0)),
            ],
            scratch_shapes=[pltpu.VMEM((heads * C, T), jnp.float32)],
        ),
        compiler_params=pltpu.CompilerParams(
            dimension_semantics=("parallel", "arbitrary"),
            vmem_limit_bytes=48 * 1024 * 1024),
        cost_estimate=pl.CostEstimate(
            flops=flops, transcendentals=transcendentals,
            bytes_accessed=bytes_accessed),
    )(sig1, pi3, p3, x_h, wfold_flat, bfold_flat, bo2)

    out = out_p[:, :, :M]
    attns = attn_p[:, :, :M, :]
    return out, attns, real_sigma


def attention_pi_reference(pi, p, x_h, sigma, wh, bh, wo, bo, *, heads):
    """Pure-JAX transcription of the PyTorch forward, for validation."""
    B, M = pi.shape
    C = x_h.shape[1]
    energies = -1.0 * (pi[:, :, None] - p[:, None, :]) ** 2         # (B, M, T)
    real_sigma = jnp.clip(sigma, 1e-6, 3.0)
    energies = energies[:, None] * real_sigma[None, :, None, None]  # (B, H, M, T)
    attns = jax.nn.softmax(energies, axis=-1)
    h = jnp.einsum('oc,bct->bot', wh, x_h) + bh[None, :, None]      # (B, 2C, T)
    h = h.reshape(B, heads, (2 * C) // heads, -1).transpose(0, 1, 3, 2)  # (B,H,T,D)
    out = jnp.matmul(attns, h)                                       # (B, H, M, D)
    out = out.transpose(0, 1, 3, 2).reshape(B, h.shape[3] * heads, -1)   # (B, 2C, M)
    out = jnp.einsum('oc,bcm->bom', wo, out) + bo[None, :, None]     # (B, C, M)
    return out, attns, real_sigma


if __name__ == "__main__":
    B, C, H = 2, 32, 4
    T_TEXT, T_MEL = 8, 16

    key = jax.random.PRNGKey(0)
    k_pi, k_p, k_x, k_wh, k_bh, k_wo, k_bo = jax.random.split(key, 7)

    # inputs
    pi = jax.random.uniform(k_pi, (B, T_MEL), jnp.float32) * float(T_TEXT)
    p = jax.random.uniform(k_p, (B, T_TEXT), jnp.float32) * float(T_TEXT)
    x_h = jax.random.normal(k_x, (B, C, T_TEXT), jnp.float32)

    # parameters (Conv1d k=1 weights squeezed to 2D)
    sigma = jnp.ones((H,), jnp.float32) * 0.1
    wh = jax.random.normal(k_wh, (2 * C, C), jnp.float32) * 0.1
    bh = jax.random.normal(k_bh, (2 * C,), jnp.float32) * 0.1
    wo = jax.random.normal(k_wo, (C, 2 * C), jnp.float32) * 0.1
    bo = jax.random.normal(k_bo, (C,), jnp.float32) * 0.1

    out, attns, real_sigma = attention_pi(pi, p, x_h, sigma, wh, bh, wo, bo, heads=H)
    jax.block_until_ready((out, attns, real_sigma))

    out_r, attns_r, sigma_r = attention_pi_reference(
        pi, p, x_h, sigma, wh, bh, wo, bo, heads=H)

    assert out.shape == (B, C, T_MEL)
    assert attns.shape == (B, H, T_MEL, T_TEXT)
    assert jnp.allclose(out, out_r, atol=2e-4, rtol=2e-4)
    assert jnp.allclose(attns, attns_r, atol=1e-5, rtol=1e-5)
    assert jnp.allclose(real_sigma, sigma_r)

    # Exercise the mel-tiling + padding + G-cache path (M > block_m, ragged M).
    M2 = 200
    pi2 = jax.random.uniform(jax.random.PRNGKey(1), (1, M2), jnp.float32) * float(T_TEXT)
    out2, attns2, _ = attention_pi(pi2, p[:1], x_h[:1], sigma, wh, bh, wo, bo,
                                   heads=H, block_m=128)
    jax.block_until_ready((out2, attns2))
    out2_r, attns2_r, _ = attention_pi_reference(
        pi2, p[:1], x_h[:1], sigma, wh, bh, wo, bo, heads=H)
    assert out2.shape == (1, C, M2)
    assert attns2.shape == (1, H, M2, T_TEXT)
    assert jnp.allclose(out2, out2_r, atol=2e-4, rtol=2e-4)
    assert jnp.allclose(attns2, attns2_r, atol=1e-5, rtol=1e-5)

    print("KERNEL_OK")
</pallas_src>

<mosaic_0001>
module attributes {stable_mosaic.version = 11 : i64} {
  func.func @_attention_pi_kernel(%arg0: i32, %arg1: i32, %arg2: memref<4xf32, #tpu.memory_space<smem>>, %arg3: memref<1x16x1xf32, #tpu.memory_space<vmem>>, %arg4: memref<1x1x8xf32, #tpu.memory_space<vmem>>, %arg5: memref<1x32x8xf32, #tpu.memory_space<vmem>>, %arg6: memref<128x32xf32, #tpu.memory_space<vmem>>, %arg7: memref<128x1xf32, #tpu.memory_space<vmem>>, %arg8: memref<32x1xf32, #tpu.memory_space<vmem>>, %arg9: memref<1x32x16xf32, #tpu.memory_space<vmem>>, %arg10: memref<1x4x16x8xf32, #tpu.memory_space<vmem>>, %arg11: memref<128x8xf32, #tpu.memory_space<vmem>>) attributes {dimension_semantics = [#tpu.dimension_semantics<parallel>, #tpu.dimension_semantics<arbitrary>], iteration_bounds = array<i64: 2, 1>, scalar_prefetch = 0 : i64, scratch_operands = 1 : i64, tpu.core_type = #tpu.core_type<tc>, window_params = [{transform_indices = @transform_0, window_bounds = array<i64: 4>}, {transform_indices = @transform_1, window_bounds = array<i64: 1, 16, 1>}, {transform_indices = @transform_2, window_bounds = array<i64: 1, 1, 8>}, {transform_indices = @transform_3, window_bounds = array<i64: 1, 32, 8>}, {pipeline_mode = #tpu.pipeline_mode<synchronous>, transform_indices = @transform_4, window_bounds = array<i64: 128, 32>}, {pipeline_mode = #tpu.pipeline_mode<synchronous>, transform_indices = @transform_5, window_bounds = array<i64: 128, 1>}, {pipeline_mode = #tpu.pipeline_mode<synchronous>, transform_indices = @transform_6, window_bounds = array<i64: 32, 1>}, {transform_indices = @transform_7, window_bounds = array<i64: 1, 32, 16>}, {transform_indices = @transform_8, window_bounds = array<i64: 1, 4, 16, 8>}]} {
    %c0_i32 = arith.constant 0 : i32
    %0 = arith.cmpi eq, %arg1, %c0_i32 : i32
    %1 = arith.extui %0 : i1 to i32
    %c0_i32_0 = arith.constant 0 : i32
    %2 = arith.cmpi ne, %1, %c0_i32_0 : i32
    scf.if %2 {
      %c0_47 = arith.constant 0 : index
      %c0_48 = arith.constant 0 : index
      %88 = vector.load %arg6[%c0_47, %c0_48] : memref<128x32xf32, #tpu.memory_space<vmem>>, vector<128x32xf32>
      %c0_49 = arith.constant 0 : index
      %c0_50 = arith.constant 0 : index
      %c0_51 = arith.constant 0 : index
      %89 = vector.load %arg5[%c0_49, %c0_50, %c0_51] : memref<1x32x8xf32, #tpu.memory_space<vmem>>, vector<1x32x8xf32>
      %90 = vector.shape_cast %89 : vector<1x32x8xf32> to vector<32x8xf32>
      %cst_52 = arith.constant dense<0.000000e+00> : vector<128x8xf32>
      %91 = tpu.matmul %88, %90, %cst_52 {dimension_numbers = #tpu.dot_dimension_numbers<[1], [0], [0], [1], [0, 0, 1, 1], [], []>} : vector<128x32xf32>, vector<32x8xf32>, vector<128x8xf32> -> vector<128x8xf32>
      %c0_53 = arith.constant 0 : index
      %c0_54 = arith.constant 0 : index
      %92 = vector.load %arg7[%c0_53, %c0_54] : memref<128x1xf32, #tpu.memory_space<vmem>>, vector<128x1xf32>
      %93 = vector.broadcast %92 : vector<128x1xf32> to vector<128x8xf32>
      %94 = arith.addf %91, %93 : vector<128x8xf32>
      %c0_55 = arith.constant 0 : index
      %c0_56 = arith.constant 0 : index
      %95 = vector.load %arg11[%c0_55, %c0_56] : memref<128x8xf32, #tpu.memory_space<vmem>>, vector<128x8xf32>
      tpu.vector_store %arg11[%c0_55, %c0_56], %94 {strides = array<i32>} : memref<128x8xf32, #tpu.memory_space<vmem>>, vector<128x8xf32>,
    } else {
    }
    %c0 = arith.constant 0 : index
    %c0_1 = arith.constant 0 : index
    %c0_2 = arith.constant 0 : index
    %3 = vector.load %arg3[%c0, %c0_1, %c0_2] : memref<1x16x1xf32, #tpu.memory_space<vmem>>, vector<1x16x1xf32>
    %4 = vector.shape_cast %3 : vector<1x16x1xf32> to vector<16x1xf32>
    %c0_3 = arith.constant 0 : index
    %c0_4 = arith.constant 0 : index
    %c0_5 = arith.constant 0 : index
    %5 = vector.load %arg4[%c0_3, %c0_4, %c0_5] : memref<1x1x8xf32, #tpu.memory_space<vmem>>, vector<1x1x8xf32>
    %6 = vector.shape_cast %5 : vector<1x1x8xf32> to vector<1x8xf32>
    %7 = vector.broadcast %4 : vector<16x1xf32> to vector<16x8xf32>
    %8 = vector.broadcast %6 : vector<1x8xf32> to vector<16x8xf32>
    %9 = arith.subf %7, %8 : vector<16x8xf32>
    %10 = arith.mulf %9, %9 : vector<16x8xf32>
    %cst = arith.constant 0.000000e+00 : f32
    %11 = vector.broadcast %cst : f32 to vector<16x8xf32>
    %12 = arith.subf %11, %10 : vector<16x8xf32>
    %cst_6 = arith.constant dense<0xFF800000> : vector<16xf32>
    %13 = vector.multi_reduction <maximumf>, %12, %cst_6 [1] : vector<16x8xf32> to vector<16xf32>
    %14 = vector.shape_cast %13 : vector<16xf32> to vector<16x1xf32>
    %15 = vector.broadcast %14 : vector<16x1xf32> to vector<16x8xf32>
    %16 = arith.subf %12, %15 : vector<16x8xf32>
    %cst_7 = arith.constant 0.000000e+00 : f32
    %17 = vector.broadcast %cst_7 : f32 to vector<32x16xf32>
    %c0_8 = arith.constant 0 : index
    %18 = memref.load %arg2[%c0_8] : memref<4xf32, #tpu.memory_space<smem>>
    %19 = vector.broadcast %18 : f32 to vector<16x8xf32>
    %20 = arith.mulf %19, %16 : vector<16x8xf32>
    %21 = math.exp %20 : vector<16x8xf32>
    %cst_9 = arith.constant dense<0.000000e+00> : vector<16xf32>
    %22 = vector.multi_reduction <add>, %21, %cst_9 [1] : vector<16x8xf32> to vector<16xf32>
    %23 = vector.shape_cast %22 : vector<16xf32> to vector<16x1xf32>
    %cst_10 = arith.constant 1.000000e+00 : f32
    %24 = vector.broadcast %cst_10 : f32 to vector<16x1xf32>
    %25 = arith.divf %24, %23 : vector<16x1xf32>
    %26 = vector.broadcast %25 : vector<16x1xf32> to vector<16x8xf32>
    %27 = arith.mulf %21, %26 : vector<16x8xf32>
    %c0_11 = arith.constant 0 : index
    %c0_12 = arith.constant 0 : index
    %c0_13 = arith.constant 0 : index
    %c0_14 = arith.constant 0 : index
    %28 = vector.load %arg10[%c0_11, %c0_12, %c0_13, %c0_14] : memref<1x4x16x8xf32, #tpu.memory_space<vmem>>, vector<1x1x16x8xf32>
    %29 = vector.shape_cast %28 : vector<1x1x16x8xf32> to vector<16x8xf32>
    %30 = vector.shape_cast %27 : vector<16x8xf32> to vector<1x1x16x8xf32>
    tpu.vector_store %arg10[%c0_11, %c0_12, %c0_13, %c0_14], %30 {strides = array<i32>} : memref<1x4x16x8xf32, #tpu.memory_space<vmem>>, vector<1x1x16x8xf32>,
    %c0_15 = arith.constant 0 : index
    %c0_16 = arith.constant 0 : index
    %31 = vector.load %arg11[%c0_15, %c0_16] : memref<128x8xf32, #tpu.memory_space<vmem>>, vector<32x8xf32>
    %cst_17 = arith.constant dense<0.000000e+00> : vector<32x16xf32>
    %32 = tpu.matmul %31, %27, %cst_17 {dimension_numbers = #tpu.dot_dimension_numbers<[1], [1], [0], [0], [0, 0, 1, 0], [], []>} : vector<32x8xf32>, vector<16x8xf32>, vector<32x16xf32> -> vector<32x16xf32>
    %33 = arith.addf %17, %32 : vector<32x16xf32>
    %c1 = arith.constant 1 : index
    %34 = memref.load %arg2[%c1] : memref<4xf32, #tpu.memory_space<smem>>
    %35 = vector.broadcast %34 : f32 to vector<16x8xf32>
    %36 = arith.mulf %35, %16 : vector<16x8xf32>
    %37 = math.exp %36 : vector<16x8xf32>
    %cst_18 = arith.constant dense<0.000000e+00> : vector<16xf32>
    %38 = vector.multi_reduction <add>, %37, %cst_18 [1] : vector<16x8xf32> to vector<16xf32>
    %39 = vector.shape_cast %38 : vector<16xf32> to vector<16x1xf32>
    %cst_19 = arith.constant 1.000000e+00 : f32
    %40 = vector.broadcast %cst_19 : f32 to vector<16x1xf32>
    %41 = arith.divf %40, %39 : vector<16x1xf32>
    %42 = vector.broadcast %41 : vector<16x1xf32> to vector<16x8xf32>
    %43 = arith.mulf %37, %42 : vector<16x8xf32>
    %c0_20 = arith.constant 0 : index
    %c1_21 = arith.constant 1 : index
    %c0_22 = arith.constant 0 : index
    %c0_23 = arith.constant 0 : index
    %44 = vector.load %arg10[%c0_20, %c1_21, %c0_22, %c0_23] : memref<1x4x16x8xf32, #tpu.memory_space<vmem>>, vector<1x1x16x8xf32>
    %45 = vector.shape_cast %44 : vector<1x1x16x8xf32> to vector<16x8xf32>
    %46 = vector.shape_cast %43 : vector<16x8xf32> to vector<1x1x16x8xf32>
    tpu.vector_store %arg10[%c0_20, %c1_21, %c0_22, %c0_23], %46 {strides = array<i32>} : memref<1x4x16x8xf32, #tpu.memory_space<vmem>>, vector<1x1x16x8xf32>,
    %c32 = arith.constant 32 : index
    %c0_24 = arith.constant 0 : index
    %47 = vector.load %arg11[%c32, %c0_24] : memref<128x8xf32, #tpu.memory_space<vmem>>, vector<32x8xf32>
    %cst_25 = arith.constant dense<0.000000e+00> : vector<32x16xf32>
    %48 = tpu.matmul %47, %43, %cst_25 {dimension_numbers = #tpu.dot_dimension_numbers<[1], [1], [0], [0], [0, 0, 1, 0], [], []>} : vector<32x8xf32>, vector<16x8xf32>, vector<32x16xf32> -> vector<32x16xf32>
    %49 = arith.addf %33, %48 : vector<32x16xf32>
    %c2 = arith.constant 2 : index
    %50 = memref.load %arg2[%c2] : memref<4xf32, #tpu.memory_space<smem>>
    %51 = vector.broadcast %50 : f32 to vector<16x8xf32>
    %52 = arith.mulf %51, %16 : vector<16x8xf32>
    %53 = math.exp %52 : vector<16x8xf32>
    %cst_26 = arith.constant dense<0.000000e+00> : vector<16xf32>
    %54 = vector.multi_reduction <add>, %53, %cst_26 [1] : vector<16x8xf32> to vector<16xf32>
    %55 = vector.shape_cast %54 : vector<16xf32> to vector<16x1xf32>
    %cst_27 = arith.constant 1.000000e+00 : f32
    %56 = vector.broadcast %cst_27 : f32 to vector<16x1xf32>
    %57 = arith.divf %56, %55 : vector<16x1xf32>
    %58 = vector.broadcast %57 : vector<16x1xf32> to vector<16x8xf32>
    %59 = arith.mulf %53, %58 : vector<16x8xf32>
    %c0_28 = arith.constant 0 : index
    %c2_29 = arith.constant 2 : index
    %c0_30 = arith.constant 0 : index
    %c0_31 = arith.constant 0 : index
    %60 = vector.load %arg10[%c0_28, %c2_29, %c0_30, %c0_31] : memref<1x4x16x8xf32, #tpu.memory_space<vmem>>, vector<1x1x16x8xf32>
    %61 = vector.shape_cast %60 : vector<1x1x16x8xf32> to vector<16x8xf32>
    %62 = vector.shape_cast %59 : vector<16x8xf32> to vector<1x1x16x8xf32>
    tpu.vector_store %arg10[%c0_28, %c2_29, %c0_30, %c0_31], %62 {strides = array<i32>} : memref<1x4x16x8xf32, #tpu.memory_space<vmem>>, vector<1x1x16x8xf32>,
    %c64 = arith.constant 64 : index
    %c0_32 = arith.constant 0 : index
    %63 = vector.load %arg11[%c64, %c0_32] : memref<128x8xf32, #tpu.memory_space<vmem>>, vector<32x8xf32>
    %cst_33 = arith.constant dense<0.000000e+00> : vector<32x16xf32>
    %64 = tpu.matmul %63, %59, %cst_33 {dimension_numbers = #tpu.dot_dimension_numbers<[1], [1], [0], [0], [0, 0, 1, 0], [], []>} : vector<32x8xf32>, vector<16x8xf32>, vector<32x16xf32> -> vector<32x16xf32>
    %65 = arith.addf %49, %64 : vector<32x16xf32>
    %c3 = arith.constant 3 : index
    %66 = memref.load %arg2[%c3] : memref<4xf32, #tpu.memory_space<smem>>
    %67 = vector.broadcast %66 : f32 to vector<16x8xf32>
    %68 = arith.mulf %67, %16 : vector<16x8xf32>
    %69 = math.exp %68 : vector<16x8xf32>
    %cst_34 = arith.constant dense<0.000000e+00> : vector<16xf32>
    %70 = vector.multi_reduction <add>, %69, %cst_34 [1] : vector<16x8xf32> to vector<16xf32>
    %71 = vector.shape_cast %70 : vector<16xf32> to vector<16x1xf32>
    %cst_35 = arith.constant 1.000000e+00 : f32
    %72 = vector.broadcast %cst_35 : f32 to vector<16x1xf32>
    %73 = arith.divf %72, %71 : vector<16x1xf32>
    %74 = vector.broadcast %73 : vector<16x1xf32> to vector<16x8xf32>
    %75 = arith.mulf %69, %74 : vector<16x8xf32>
    %c0_36 = arith.constant 0 : index
    %c3_37 = arith.constant 3 : index
    %c0_38 = arith.constant 0 : index
    %c0_39 = arith.constant 0 : index
    %76 = vector.load %arg10[%c0_36, %c3_37, %c0_38, %c0_39] : memref<1x4x16x8xf32, #tpu.memory_space<vmem>>, vector<1x1x16x8xf32>
    %77 = vector.shape_cast %76 : vector<1x1x16x8xf32> to vector<16x8xf32>
    %78 = vector.shape_cast %75 : vector<16x8xf32> to vector<1x1x16x8xf32>
    tpu.vector_store %arg10[%c0_36, %c3_37, %c0_38, %c0_39], %78 {strides = array<i32>} : memref<1x4x16x8xf32, #tpu.memory_space<vmem>>, vector<1x1x16x8xf32>,
    %c96 = arith.constant 96 : index
    %c0_40 = arith.constant 0 : index
    %79 = vector.load %arg11[%c96, %c0_40] : memref<128x8xf32, #tpu.memory_space<vmem>>, vector<32x8xf32>
    %cst_41 = arith.constant dense<0.000000e+00> : vector<32x16xf32>
    %80 = tpu.matmul %79, %75, %cst_41 {dimension_numbers = #tpu.dot_dimension_numbers<[1], [1], [0], [0], [0, 0, 1, 0], [], []>} : vector<32x8xf32>, vector<16x8xf32>, vector<32x16xf32> -> vector<32x16xf32>
    %81 = arith.addf %65, %80 : vector<32x16xf32>
    %c0_42 = arith.constant 0 : index
    %c0_43 = arith.constant 0 : index
    %82 = vector.load %arg8[%c0_42, %c0_43] : memref<32x1xf32, #tpu.memory_space<vmem>>, vector<32x1xf32>
    %83 = vector.broadcast %82 : vector<32x1xf32> to vector<32x16xf32>
    %84 = arith.addf %81, %83 : vector<32x16xf32>
    %c0_44 = arith.constant 0 : index
    %c0_45 = arith.constant 0 : index
    %c0_46 = arith.constant 0 : index
    %85 = vector.load %arg9[%c0_44, %c0_45, %c0_46] : memref<1x32x16xf32, #tpu.memory_space<vmem>>, vector<1x32x16xf32>
    %86 = vector.shape_cast %85 : vector<1x32x16xf32> to vector<32x16xf32>
    %87 = vector.shape_cast %84 : vector<32x16xf32> to vector<1x32x16xf32>
    tpu.vector_store %arg9[%c0_44, %c0_45, %c0_46], %87 {strides = array<i32>} : memref<1x32x16xf32, #tpu.memory_space<vmem>>, vector<1x32x16xf32>,
    return
  }
  func.func @transform_0(%arg0: i32, %arg1: i32) -> i32 {
    %c0_i32 = arith.constant 0 : i32
    %c0_i32_0 = arith.constant 0 : i32
    return %c0_i32 : i32
  }
  func.func @transform_1(%arg0: i32, %arg1: i32) -> (i32, i32, i32) {
    %c0_i32 = arith.constant 0 : i32
    %c0_i32_0 = arith.constant 0 : i32
    return %arg0, %arg1, %c0_i32 : i32, i32, i32
  }
  func.func @transform_2(%arg0: i32, %arg1: i32) -> (i32, i32, i32) {
    %c0_i32 = arith.constant 0 : i32
    %c0_i32_0 = arith.constant 0 : i32
    %c0_i32_1 = arith.constant 0 : i32
    return %arg0, %c0_i32, %c0_i32_0 : i32, i32, i32
  }
  func.func @transform_3(%arg0: i32, %arg1: i32) -> (i32, i32, i32) {
    %c0_i32 = arith.constant 0 : i32
    %c0_i32_0 = arith.constant 0 : i32
    %c0_i32_1 = arith.constant 0 : i32
    return %arg0, %c0_i32, %c0_i32_0 : i32, i32, i32
  }
  func.func @transform_4(%arg0: i32, %arg1: i32) -> (i32, i32) {
    %c0_i32 = arith.constant 0 : i32
    %c0_i32_0 = arith.constant 0 : i32
    %c0_i32_1 = arith.constant 0 : i32
    return %c0_i32, %c0_i32_0 : i32, i32
  }
  func.func @transform_5(%arg0: i32, %arg1: i32) -> (i32, i32) {
    %c0_i32 = arith.constant 0 : i32
    %c0_i32_0 = arith.constant 0 : i32
    %c0_i32_1 = arith.constant 0 : i32
    return %c0_i32, %c0_i32_0 : i32, i32
  }
  func.func @transform_6(%arg0: i32, %arg1: i32) -> (i32, i32) {
    %c0_i32 = arith.constant 0 : i32
    %c0_i32_0 = arith.constant 0 : i32
    %c0_i32_1 = arith.constant 0 : i32
    return %c0_i32, %c0_i32_0 : i32, i32
  }
  func.func @transform_7(%arg0: i32, %arg1: i32) -> (i32, i32, i32) {
    %c0_i32 = arith.constant 0 : i32
    %c0_i32_0 = arith.constant 0 : i32
    return %arg0, %c0_i32, %arg1 : i32, i32, i32
  }
  func.func @transform_8(%arg0: i32, %arg1: i32) -> (i32, i32, i32, i32) {
    %c0_i32 = arith.constant 0 : i32
    %c0_i32_0 = arith.constant 0 : i32
    %c0_i32_1 = arith.constant 0 : i32
    return %arg0, %c0_i32, %arg1, %c0_i32_0 : i32, i32, i32, i32
  }
}

</mosaic_0001>

<llo_original>
// kernel: tpu_custom_call.1
$region0: #{tpu_custom_call.1}
  #allocation0 [shape = 'u32[]', space=smem, size = 0x4, offset = 0x4, fixed_abs, tag = 'smem constant byte address 0x4 - core index']
  #allocation1 [shape = 'u32[144,128]{1,0:T(1,128)}', space=vmem, size = 0x12000, scoped, tag = 'internal scratch']
  #allocation2 [shape = 'f32[128,8]{1,0:T(8,128)}', space=vmem, size = 0x10000, scoped, tag = 'scratch operand']
  %s0 = inlined_call_operand.vmem [shape: f32[4], index: 0, kind: input, shape index: {}]
  %s1 = inlined_call_operand.vmem [shape: f32[2,16,1], index: 1, kind: input, shape index: {}]
  %s2 = inlined_call_operand.vmem [shape: f32[2,1,8], index: 2, kind: input, shape index: {}]
  %s3 = inlined_call_operand.vmem [shape: f32[2,32,8], index: 3, kind: input, shape index: {}]
  %s4 = inlined_call_operand.vmem [shape: f32[128,32], index: 4, kind: input, shape index: {}]
  %s5 = inlined_call_operand.vmem [shape: f32[128,1], index: 5, kind: input, shape index: {}]
  %s6 = inlined_call_operand.vmem [shape: f32[32,1], index: 6, kind: input, shape index: {}]
  %s7 = inlined_call_operand.vmem [shape: f32[2,32,16], index: 7, kind: output, shape index: {0}]
  %s8 = inlined_call_operand.vmem [shape: f32[2,4,16,8], index: 8, kind: output, shape index: {1}]
  %9 = xla_tuple %s7, %s8
  %s10 = sld [smem:[#allocation0]]
  $region77: #{tpu_custom_call.1} parent=0
    _
  %s12 = ssub.s32 1, %s10
  %s13 = scalar_select 0, %s12, %s10
  $region1: #{tpu_custom_call.1} parent=0
    #allocation3 [shape = 'u8[512]{0}', space=smem, size = 0x200, scoped, tag = 'input window, operand 0, single buffered']
    #allocation4 [shape = 's32[2]{0}', space=sflag, size = 0x8, scoped, tag = 'scoped memory for tpu_custom_call.1']
    %14 = vsyncpa [#allocation4], 0
    loop: start=0, step=1, limit=4
    $region2: #{tpu_custom_call.1} parent=1 // loop_pre_header
      _
    $region3: #{tpu_custom_call.1} parent=1 // loop_header
      %s16 = sphi 0, %s20
      %p17 = scmp.ge.s32.totalorder %s16, 4
      %s23 = sphi 0, %s35
      %s24 = sphi 0, %s31
      %s25 = sphi 0, %s23
      %s26 = sphi 0, %s24
      %s27 = sphi 0, %s25
      %s28 = sphi 0, %s26
      %s36 = sphi 0, %s36
      %s38 = sphi 0, %s36
      %s39 = sphi 0, %s38
      %s53 = sphi 0, %s39
      %s61 = sphi 0, %s63
      %s64 = sphi 0, %s61
      %s65 = sphi 0, %s64
      %s81 = sphi 0, %s65
      %s87 = sphi 0, %s89
      %s90 = sphi 0, %s87
      %s91 = sphi 0, %s90
      %s107 = sphi 0, %s91
      %s113 = sphi 0, %s115
      %s116 = sphi 0, %s113
      %s117 = sphi 0, %s116
      %s133 = sphi 0, %s117
      %s137 = sphi 0, %s137
      %s139 = sphi 0, %s137
      %s140 = sphi 0, %s139
      %s154 = sphi 0, %s140
      %s158 = sphi 0, %s158
      %s160 = sphi 0, %s158
      %s161 = sphi 0, %s160
      %s175 = sphi 0, %s161
      %s179 = sphi 0, %s179
      %s181 = sphi 0, %s179
      %s182 = sphi 0, %s181
      %s196 = sphi 0, %s182
      %s204 = sphi 0, %s206
      %s207 = sphi 0, %s204
      %s208 = sphi 0, %s207
      %s224 = sphi 0, %s208
      %s232 = sphi 0, %s234
      %s235 = sphi 0, %s232
      %s236 = sphi 0, %s235
      %s252 = sphi 0, %s236
    $region4: #{tpu_custom_call.1} parent=1 // loop_header_branch
      %19 = sbr.rel (%p17) target = $region8
    $region5: #{tpu_custom_call.1} parent=1 // loop_body
      %s21 = ssub.s32 %s16, 1
      %s22 = ssub.s32 %s16, 2
      %s29 = sadd.s32 1, %s24
      %p30 = scmp.ge.s32.totalorder %s29, 1
      %s31 = scalar_select %p30, 0, %s29
      %s32 = sadd.s32 1, %s23
      %s33 = scalar_select %p30, %s32, %s23
      %p34 = scmp.ge.s32.totalorder %s33, 2
      %s35 = scalar_select %p34, 0, %s33
      %s37 = sadd.s32 %s36, 1
      %p40 = scmp.eq.s32.totalorder %s16, 1
      %p41 = scmp.ne.s32.totalorder %s36, %s38
      %p42 = scmp.eq.s32.totalorder %s16, 0
      %p43 = por %p41, %p42
      %p44 = scmp.ne.s32.totalorder %s36, %s38
      %p45 = scmp.eq.s32.totalorder %s21, 1
      %p46 = por %p44, %p45
      %p47 = scmp.ne.s32.totalorder %s38, %s39
      %p48 = scmp.eq.s32.totalorder %s21, 0
      %p49 = por %p47, %p48
      %p50 = scmp.ne.s32.totalorder %s38, %s39
      %p51 = scmp.eq.s32.totalorder %s22, 1
      %p52 = por %p50, %p51
      %p54 = scmp.ne.s32.totalorder %s39, %s53
      %p55 = scmp.eq.s32.totalorder %s22, 0
      %p56 = por %p54, %p55
      %s57 = ssub.s32 %s23, %s35
      %s58 = ssub.s32 %s24, %s31
      %s59 = sor.u32 %s57, %s58
      %p60 = scmp.eq.s32.totalorder %s59, 0
      %s62 = sadd.s32 %s61, 1
      %s63 = scalar_select %p60, %s61, %s62
      %p66 = pneg %p60
      %p67 = scmp.eq.s32.totalorder %s16, 1
      %p68 = por %p66, %p67
      %p69 = scmp.ne.s32.totalorder %s61, %s64
      %p70 = scmp.eq.s32.totalorder %s16, 0
      %p71 = por %p69, %p70
      %p72 = scmp.ne.s32.totalorder %s61, %s64
      %p73 = scmp.eq.s32.totalorder %s21, 1
      %p74 = por %p72, %p73
      %p75 = scmp.ne.s32.totalorder %s64, %s65
      %p76 = scmp.eq.s32.totalorder %s21, 0
      %p77 = por %p75, %p76
      %p78 = scmp.ne.s32.totalorder %s64, %s65
      %p79 = scmp.eq.s32.totalorder %s22, 1
      %p80 = por %p78, %p79
      %p82 = scmp.ne.s32.totalorder %s65, %s81
      %p83 = scmp.eq.s32.totalorder %s22, 0
      %p84 = por %p82, %p83
      %s85 = ssub.s32 %s23, %s35
      %p86 = scmp.eq.s32.totalorder %s85, 0
      %s88 = sadd.s32 %s87, 1
      %s89 = scalar_select %p86, %s87, %s88
      %p92 = pneg %p86
      %p93 = scmp.eq.s32.totalorder %s16, 1
      %p94 = por %p92, %p93
      %p95 = scmp.ne.s32.totalorder %s87, %s90
      %p96 = scmp.eq.s32.totalorder %s16, 0
      %p97 = por %p95, %p96
      %p98 = scmp.ne.s32.totalorder %s87, %s90
      %p99 = scmp.eq.s32.totalorder %s21, 1
      %p100 = por %p98, %p99
      %p101 = scmp.ne.s32.totalorder %s90, %s91
      %p102 = scmp.eq.s32.totalorder %s21, 0
      %p103 = por %p101, %p102
      %p104 = scmp.ne.s32.totalorder %s90, %s91
      %p105 = scmp.eq.s32.totalorder %s22, 1
      %p106 = por %p104, %p105
      %p108 = scmp.ne.s32.totalorder %s91, %s107
      %p109 = scmp.eq.s32.totalorder %s22, 0
      %p110 = por %p108, %p109
      %s111 = ssub.s32 %s23, %s35
      %p112 = scmp.eq.s32.totalorder %s111, 0
      %s114 = sadd.s32 %s113, 1
      %s115 = scalar_select %p112, %s113, %s114
      %p118 = pneg %p112
      %p119 = scmp.eq.s32.totalorder %s16, 1
      %p120 = por %p118, %p119
      %p121 = scmp.ne.s32.totalorder %s113, %s116
      %p122 = scmp.eq.s32.totalorder %s16, 0
      %p123 = por %p121, %p122
      %p124 = scmp.ne.s32.totalorder %s113, %s116
      %p125 = scmp.eq.s32.totalorder %s21, 1
      %p126 = por %p124, %p125
      %p127 = scmp.ne.s32.totalorder %s116, %s117
      %p128 = scmp.eq.s32.totalorder %s21, 0
      %p129 = por %p127, %p128
      %p130 = scmp.ne.s32.totalorder %s116, %s117
      %p131 = scmp.eq.s32.totalorder %s22, 1
      %p132 = por %p130, %p131
      %p134 = scmp.ne.s32.totalorder %s117, %s133
      %p135 = scmp.eq.s32.totalorder %s22, 0
      %p136 = por %p134, %p135
      %s138 = sadd.s32 %s137, 1
      %p141 = scmp.eq.s32.totalorder %s16, 1
      %p142 = scmp.ne.s32.totalorder %s137, %s139
      %p143 = scmp.eq.s32.totalorder %s16, 0
      %p144 = por %p142, %p143
      %p145 = scmp.ne.s32.totalorder %s137, %s139
      %p146 = scmp.eq.s32.totalorder %s21, 1
      %p147 = por %p145, %p146
      %p148 = scmp.ne.s32.totalorder %s139, %s140
      %p149 = scmp.eq.s32.totalorder %s21, 0
      %p150 = por %p148, %p149
      %p151 = scmp.ne.s32.totalorder %s139, %s140
      %p152 = scmp.eq.s32.totalorder %s22, 1
      %p153 = por %p151, %p152
      %p155 = scmp.ne.s32.totalorder %s140, %s154
      %p156 = scmp.eq.s32.totalorder %s22, 0
      %p157 = por %p155, %p156
      %s159 = sadd.s32 %s158, 1
      %p162 = scmp.eq.s32.totalorder %s16, 1
      %p163 = scmp.ne.s32.totalorder %s158, %s160
      %p164 = scmp.eq.s32.totalorder %s16, 0
      %p165 = por %p163, %p164
      %p166 = scmp.ne.s32.totalorder %s158, %s160
      %p167 = scmp.eq.s32.totalorder %s21, 1
      %p168 = por %p166, %p167
      %p169 = scmp.ne.s32.totalorder %s160, %s161
      %p170 = scmp.eq.s32.totalorder %s21, 0
      %p171 = por %p169, %p170
      %p172 = scmp.ne.s32.totalorder %s160, %s161
      %p173 = scmp.eq.s32.totalorder %s22, 1
      %p174 = por %p172, %p173
      %p176 = scmp.ne.s32.totalorder %s161, %s175
      %p177 = scmp.eq.s32.totalorder %s22, 0
      %p178 = por %p176, %p177
      %s180 = sadd.s32 %s179, 1
      %p183 = scmp.eq.s32.totalorder %s16, 1
      %p184 = scmp.ne.s32.totalorder %s179, %s181
      %p185 = scmp.eq.s32.totalorder %s16, 0
      %p186 = por %p184, %p185
      %p187 = scmp.ne.s32.totalorder %s179, %s181
      %p188 = scmp.eq.s32.totalorder %s21, 1
      %p189 = por %p187, %p188
      %p190 = scmp.ne.s32.totalorder %s181, %s182
      %p191 = scmp.eq.s32.totalorder %s21, 0
      %p192 = por %p190, %p191
      %p193 = scmp.ne.s32.totalorder %s181, %s182
      %p194 = scmp.eq.s32.totalorder %s22, 1
      %p195 = por %p193, %p194
      %p197 = scmp.ne.s32.totalorder %s182, %s196
      %p198 = scmp.eq.s32.totalorder %s22, 0
      %p199 = por %p197, %p198
      %s200 = ssub.s32 %s23, %s35
      %s201 = ssub.s32 %s24, %s31
      %s202 = sor.u32 %s200, %s201
      %p203 = scmp.eq.s32.totalorder %s202, 0
      %s205 = sadd.s32 %s204, 1
      %s206 = scalar_select %p203, %s204, %s205
      %p209 = pneg %p203
      %p210 = scmp.eq.s32.totalorder %s16, 1
      %p211 = por %p209, %p210
      %p212 = scmp.ne.s32.totalorder %s204, %s207
      %p213 = scmp.eq.s32.totalorder %s16, 0
      %p214 = por %p212, %p213
      %p215 = scmp.ne.s32.totalorder %s204, %s207
      %p216 = scmp.eq.s32.totalorder %s21, 1
      %p217 = por %p215, %p216
      %p218 = scmp.ne.s32.totalorder %s207, %s208
      %p219 = scmp.eq.s32.totalorder %s21, 0
      %p220 = por %p218, %p219
      %p221 = scmp.ne.s32.totalorder %s207, %s208
      %p222 = scmp.eq.s32.totalorder %s22, 1
      %p223 = por %p221, %p222
      %p225 = scmp.ne.s32.totalorder %s208, %s224
      %p226 = scmp.eq.s32.totalorder %s22, 0
      %p227 = por %p225, %p226
      %s228 = ssub.s32 %s23, %s35
      %s229 = ssub.s32 %s24, %s31
      %s230 = sor.u32 %s228, %s229
      %p231 = scmp.eq.s32.totalorder %s230, 0
      %s233 = sadd.s32 %s232, 1
      %s234 = scalar_select %p231, %s232, %s233
      %p237 = pneg %p231
      %p238 = scmp.eq.s32.totalorder %s16, 1
      %p239 = por %p237, %p238
      %p240 = scmp.ne.s32.totalorder %s232, %s235
      %p241 = scmp.eq.s32.totalorder %s16, 0
      %p242 = por %p240, %p241
      %p243 = scmp.ne.s32.totalorder %s232, %s235
      %p244 = scmp.eq.s32.totalorder %s21, 1
      %p245 = por %p243, %p244
      %p246 = scmp.ne.s32.totalorder %s235, %s236
      %p247 = scmp.eq.s32.totalorder %s21, 0
      %p248 = por %p246, %p247
      %p249 = scmp.ne.s32.totalorder %s235, %s236
      %p250 = scmp.eq.s32.totalorder %s22, 1
      %p251 = por %p249, %p250
      %p253 = scmp.ne.s32.totalorder %s236, %s252
      %p254 = scmp.eq.s32.totalorder %s22, 0
      %p255 = por %p253, %p254
      %p256 = scmp.le.s32.totalorder 1, %s16
      %p257 = scmp.lt.s32.totalorder %s16, 3
      %p258 = pnand %p256, %p257
      %p259 = pneg %p258
      // Predicated region
      $region9: #{tpu_custom_call.1} parent=5 // pred_check
        _
      $region10: #{tpu_custom_call.1} parent=5 // pred_check_branch
        %261 = sbr.rel (%p258) target = $region12
      $region11: #{tpu_custom_call.1} parent=5 // pred_region
        %s262 = ssub.s32 %s16, 1
        // Predicated region
        $region13: #{tpu_custom_call.1} parent=11 // pred_check
          %p263 = pneg %p49
        $region14: #{tpu_custom_call.1} parent=11 // pred_check_branch
          %265 = sbr.rel (%p263) target = $region16
        $region15: #{tpu_custom_call.1} parent=11 // pred_region
          %s267 = ssub.s32 16, 16
          %268 = vsyncadd [#allocation4], %s267
          %s270 = sshll.u32 %s0, 4
          %s271 = int_to_ptr.vmem [resolvable:$true] %s270
          %273 = dma.vmem_to_smem %s271, 16, [#allocation3], [#allocation4]
        $region16: #{tpu_custom_call.1} parent=11 // pred_fallthru
          _
        // Predicated region
        $region17: #{tpu_custom_call.1} parent=11 // pred_check
          %p274 = pneg %p150
        $region18: #{tpu_custom_call.1} parent=11 // pred_check_branch
          %276 = sbr.rel (%p274) target = $region20
        $region19: #{tpu_custom_call.1} parent=11 // pred_region
          _
        $region20: #{tpu_custom_call.1} parent=11 // pred_fallthru
          _
        // Predicated region
        $region21: #{tpu_custom_call.1} parent=11 // pred_check
          %p277 = pneg %p171
        $region22: #{tpu_custom_call.1} parent=11 // pred_check_branch
          %279 = sbr.rel (%p277) target = $region24
        $region23: #{tpu_custom_call.1} parent=11 // pred_region
          _
        $region24: #{tpu_custom_call.1} parent=11 // pred_fallthru
          _
        // Predicated region
        $region25: #{tpu_custom_call.1} parent=11 // pred_check
          %p280 = pneg %p192
        $region26: #{tpu_custom_call.1} parent=11 // pred_check_branch
          %282 = sbr.rel (%p280) target = $region28
        $region27: #{tpu_custom_call.1} parent=11 // pred_region
          _
        $region28: #{tpu_custom_call.1} parent=11 // pred_fallthru
          _
      $region12: #{tpu_custom_call.1} parent=5 // pred_fallthru
        _
      %p283 = scmp.lt.s32.totalorder %s16, 2
      // Predicated region
      $region29: #{tpu_custom_call.1} parent=5 // pred_check
        %p284 = pneg %p283
      $region30: #{tpu_custom_call.1} parent=5 // pred_check_branch
        %286 = sbr.rel (%p284) target = $region32
      $region31: #{tpu_custom_call.1} parent=5 // pred_region
        // Predicated region
        $region33: #{tpu_custom_call.1} parent=31 // pred_check
          %p287 = pneg %p71
        $region34: #{tpu_custom_call.1} parent=31 // pred_check_branch
          %289 = sbr.rel (%p287) target = $region36
        $region35: #{tpu_custom_call.1} parent=31 // pred_region
          %s290 = smul.u32 2, %s24
          %p291 = scmp.lt.s32.totalorder %s23, 1
          %s292 = scalar_select %p291, %s23, 1
          %p293 = scmp.lt.s32.totalorder %s290, 1
          %s294 = scalar_select %p293, %s290, 1
          %s295 = smul.addr %s292, 2
          %s296 = sadd.s32 %s294, %s295
          %s297 = smul.addr %s296, 8
          %s298 = scalar_lea.vmem %s1, %s297
          %s299 = smul.u32 2, %s24
        $region36: #{tpu_custom_call.1} parent=31 // pred_fallthru
          _
        // Predicated region
        $region37: #{tpu_custom_call.1} parent=31 // pred_check
          %p300 = pneg %p97
        $region38: #{tpu_custom_call.1} parent=31 // pred_check_branch
          %302 = sbr.rel (%p300) target = $region40
        $region39: #{tpu_custom_call.1} parent=31 // pred_region
          %p303 = scmp.lt.s32.totalorder %s23, 1
          %s304 = scalar_select %p303, %s23, 1
          %s305 = scalar_lea.vmem %s2, %s304
        $region40: #{tpu_custom_call.1} parent=31 // pred_fallthru
          _
        // Predicated region
        $region41: #{tpu_custom_call.1} parent=31 // pred_check
          %p306 = pneg %p123
        $region42: #{tpu_custom_call.1} parent=31 // pred_check_branch
          %308 = sbr.rel (%p306) target = $region44
        $region43: #{tpu_custom_call.1} parent=31 // pred_region
          %p309 = scmp.lt.s32.totalorder %s23, 1
          %s310 = scalar_select %p309, %s23, 1
          %s311 = smul.addr %s310, 4
          %s312 = smul.addr %s311, 8
          %s313 = scalar_lea.vmem %s3, %s312
        $region44: #{tpu_custom_call.1} parent=31 // pred_fallthru
          _
      $region32: #{tpu_custom_call.1} parent=5 // pred_fallthru
        _
      %p314 = scmp.le.s32.totalorder 1, %s16
      %p315 = scmp.lt.s32.totalorder %s16, 3
      %p316 = pnand %p314, %p315
      %p317 = pneg %p316
      // Predicated region
      $region45: #{tpu_custom_call.1} parent=5 // pred_check
        _
      $region46: #{tpu_custom_call.1} parent=5 // pred_check_branch
        %319 = sbr.rel (%p316) target = $region48
      $region47: #{tpu_custom_call.1} parent=5 // pred_region
        %s320 = ssub.s32 %s16, 1
        // Predicated region
        $region49: #{tpu_custom_call.1} parent=47 // pred_check
          %p321 = pneg %p49
        $region50: #{tpu_custom_call.1} parent=47 // pred_check_branch
          %323 = sbr.rel (%p321) target = $region52
        $region51: #{tpu_custom_call.1} parent=47 // pred_region
          %324 = dma.done [#allocation4], 16
        $region52: #{tpu_custom_call.1} parent=47 // pred_fallthru
          _
        %325 = sfence
        %p326 = pneg %p49
        %p327 = pneg %p46
        %s328 = smul.u32 2, %s26
        %p329 = scmp.lt.s32.totalorder %s25, 1
        %s330 = scalar_select %p329, %s25, 1
        %p331 = scmp.lt.s32.totalorder %s328, 1
        %s332 = scalar_select %p331, %s328, 1
        %s333 = smul.addr %s330, 2
        %s334 = sadd.s32 %s332, %s333
        %s335 = smul.addr %s334, 8
        %s336 = scalar_lea.vmem %s1, %s335
        %p337 = pneg %p77
        %p338 = pneg %p74
        %p339 = scmp.lt.s32.totalorder %s25, 1
        %s340 = scalar_select %p339, %s25, 1
        %s341 = scalar_lea.vmem %s2, %s340
        %p342 = pneg %p103
        %p343 = pneg %p100
        %p344 = scmp.lt.s32.totalorder %s25, 1
        %s345 = scalar_select %p344, %s25, 1
        %s346 = smul.addr %s345, 4
        %s347 = smul.addr %s346, 8
        %s348 = scalar_lea.vmem %s3, %s347
        %p349 = pneg %p129
        %p350 = pneg %p126
        %p351 = pneg %p150
        %p352 = pneg %p147
        %p353 = pneg %p171
        %p354 = pneg %p168
        %p355 = pneg %p192
        %p356 = pneg %p189
        %p357 = pneg %p220
        %p358 = pneg %p217
        %p359 = scmp.lt.s32.totalorder %s25, 1
        %s360 = scalar_select %p359, %s25, 1
        %p361 = scmp.lt.s32.totalorder %s26, 0
        %s362 = scalar_select %p361, %s26, 0
        %s363 = smul.addr %s360, 4
        %s364 = sadd.s32 %s362, %s363
        %s365 = smul.addr %s364, 8
        %s366 = scalar_lea.vmem %s7, %s365
        %p367 = pneg %p248
        %p368 = pneg %p245
        %s369 = smul.u32 2, %s26
        %p370 = scmp.lt.s32.totalorder %s25, 1
        %s371 = scalar_select %p370, %s25, 1
        %p372 = scmp.lt.s32.totalorder %s369, 1
        %s373 = scalar_select %p372, %s369, 1
        %s374 = smul.addr %s371, 8
        %s375 = sadd.s32 %s373, %s374
        %s376 = smul.addr %s375, 8
        %s377 = scalar_lea.vmem %s8, %s376
        %s378 = smul.u32 2, %s26
        %p379 = scmp.lt.s32.totalorder %s25, 1
        %s380 = scalar_select %p379, %s25, 1
        %p381 = scmp.lt.s32.totalorder %s378, 1
        %s382 = scalar_select %p381, %s378, 1
        %s383 = smul.addr %s380, 2
        %s384 = sadd.s32 %s382, %s383
        %s385 = smul.addr %s384, 8
        %s386 = scalar_lea.vmem %s1, %s385
        %s387 = smul.u32 2, %s26
        %p388 = scmp.lt.s32.totalorder %s25, 1
        %s389 = scalar_select %p388, %s25, 1
        %s390 = scalar_lea.vmem %s2, %s389
        %p391 = scmp.lt.s32.totalorder %s25, 1
        %s392 = scalar_select %p391, %s25, 1
        %s393 = smul.addr %s392, 4
        %s394 = smul.addr %s393, 8
        %s395 = scalar_lea.vmem %s3, %s394
        %p396 = scmp.lt.s32.totalorder %s25, 1
        %s397 = scalar_select %p396, %s25, 1
        %p398 = scmp.lt.s32.totalorder %s26, 0
        %s399 = scalar_select %p398, %s26, 0
        %s400 = smul.addr %s397, 4
        %s401 = sadd.s32 %s399, %s400
        %s402 = smul.addr %s401, 8
        %s403 = scalar_lea.vmem %s7, %s402
        %s404 = smul.u32 2, %s26
        %p405 = scmp.lt.s32.totalorder %s25, 1
        %s406 = scalar_select %p405, %s25, 1
        %p407 = scmp.lt.s32.totalorder %s404, 1
        %s408 = scalar_select %p407, %s404, 1
        %s409 = smul.addr %s406, 8
        %s410 = sadd.s32 %s408, %s409
        %s411 = smul.addr %s410, 8
        %s412 = scalar_lea.vmem %s8, %s411
        %s413 = smul.u32 2, %s26
        %p414 = scmp.eq.s32.totalorder %s26, 0
        // Predicated region
        $region53: #{tpu_custom_call.1} parent=47 // pred_check
          %p415 = pneg %p414
        $region54: #{tpu_custom_call.1} parent=47 // pred_check_branch
          %417 = sbr.rel (%p415) target = $region56
        $region55: #{tpu_custom_call.1} parent=47 // pred_region
          %v418 = vld [vmem:[%s4] sm:$0xff]
          %v419 = vld [vmem:[%s4 + $0x8] sm:$0xff]
          %v420 = vld [vmem:[%s4 + $0x10] sm:$0xff]
          %v421 = vld [vmem:[%s4 + $0x18] sm:$0xff]
          %v422 = vld [vmem:[%s4 + $0x20] sm:$0xff]
          %v423 = vld [vmem:[%s4 + $0x28] sm:$0xff]
          %v424 = vld [vmem:[%s4 + $0x30] sm:$0xff]
          %v425 = vld [vmem:[%s4 + $0x38] sm:$0xff]
          %v426 = vld [vmem:[%s4 + $0x40] sm:$0xff]
          %v427 = vld [vmem:[%s4 + $0x48] sm:$0xff]
          %v428 = vld [vmem:[%s4 + $0x50] sm:$0xff]
          %v429 = vld [vmem:[%s4 + $0x58] sm:$0xff]
          %v430 = vld [vmem:[%s4 + $0x60] sm:$0xff]
          %v431 = vld [vmem:[%s4 + $0x68] sm:$0xff]
          %v432 = vld [vmem:[%s4 + $0x70] sm:$0xff]
          %v433 = vld [vmem:[%s4 + $0x78] sm:$0xff]
          %v434 = vld [vmem:[%s395] sm:$0xff]
          %v435 = vld [vmem:[%s395 + $0x8] sm:$0xff]
          %v436 = vld [vmem:[%s395 + $0x10] sm:$0xff]
          %v437 = vld [vmem:[%s395 + $0x18] sm:$0xff]
          %v438 = vld [vmem:[%s5] sm:$0xff]
          %v439 = vld [vmem:[%s5 + $0x8] sm:$0xff]
          %v440 = vld [vmem:[%s5 + $0x10] sm:$0xff]
          %v441 = vld [vmem:[%s5 + $0x18] sm:$0xff]
          %v442 = vld [vmem:[%s5 + $0x20] sm:$0xff]
          %v443 = vld [vmem:[%s5 + $0x28] sm:$0xff]
          %v444 = vld [vmem:[%s5 + $0x30] sm:$0xff]
          %v445 = vld [vmem:[%s5 + $0x38] sm:$0xff]
          %v446 = vld [vmem:[%s5 + $0x40] sm:$0xff]
          %v447 = vld [vmem:[%s5 + $0x48] sm:$0xff]
          %v448 = vld [vmem:[%s5 + $0x50] sm:$0xff]
          %v449 = vld [vmem:[%s5 + $0x58] sm:$0xff]
          %v450 = vld [vmem:[%s5 + $0x60] sm:$0xff]
          %v451 = vld [vmem:[%s5 + $0x68] sm:$0xff]
          %v452 = vld [vmem:[%s5 + $0x70] sm:$0xff]
          %v453 = vld [vmem:[%s5 + $0x78] sm:$0xff]
          %455 = vset.pattern.permute.xlu0 0
          %456 = vperm.xlu0 %455, %v438
          %v457 = vpop.permute.xlu0 %456
          %460 = vset.pattern.permute.xlu0 0
          %461 = vperm.xlu0 %460, %v439
          %v462 = vpop.permute.xlu0 %461
          %465 = vset.pattern.permute.xlu0 0
          %466 = vperm.xlu0 %465, %v440
          %v467 = vpop.permute.xlu0 %466
          %470 = vset.pattern.permute.xlu0 0
          %471 = vperm.xlu0 %470, %v441
          %v472 = vpop.permute.xlu0 %471
          %475 = vset.pattern.permute.xlu0 0
          %476 = vperm.xlu0 %475, %v442
          %v477 = vpop.permute.xlu0 %476
          %480 = vset.pattern.permute.xlu0 0
          %481 = vperm.xlu0 %480, %v443
          %v482 = vpop.permute.xlu0 %481
          %485 = vset.pattern.permute.xlu0 0
          %486 = vperm.xlu0 %485, %v444
          %v487 = vpop.permute.xlu0 %486
          %490 = vset.pattern.permute.xlu0 0
          %491 = vperm.xlu0 %490, %v445
          %v492 = vpop.permute.xlu0 %491
          %495 = vset.pattern.permute.xlu0 0
          %496 = vperm.xlu0 %495, %v446
          %v497 = vpop.permute.xlu0 %496
          %500 = vset.pattern.permute.xlu0 0
          %501 = vperm.xlu0 %500, %v447
          %v502 = vpop.permute.xlu0 %501
          %505 = vset.pattern.permute.xlu0 0
          %506 = vperm.xlu0 %505, %v448
          %v507 = vpop.permute.xlu0 %506
          %510 = vset.pattern.permute.xlu0 0
          %511 = vperm.xlu0 %510, %v449
          %v512 = vpop.permute.xlu0 %511
          %515 = vset.pattern.permute.xlu0 0
          %516 = vperm.xlu0 %515, %v450
          %v517 = vpop.permute.xlu0 %516
          %520 = vset.pattern.permute.xlu0 0
          %521 = vperm.xlu0 %520, %v451
          %v522 = vpop.permute.xlu0 %521
          %525 = vset.pattern.permute.xlu0 0
          %526 = vperm.xlu0 %525, %v452
          %v527 = vpop.permute.xlu0 %526
          %530 = vset.pattern.permute.xlu0 0
          %531 = vperm.xlu0 %530, %v453
          %v532 = vpop.permute.xlu0 %531
          %vm534 = vcmask 261120
          %v536 = vsel %vm534, %v418, 0
          %v539 = vsel %vm534, %v419, 0
          %v542 = vsel %vm534, %v420, 0
          %v545 = vsel %vm534, %v421, 0
          %v548 = vsel %vm534, %v422, 0
          %v551 = vsel %vm534, %v423, 0
          %v554 = vsel %vm534, %v424, 0
          %v557 = vsel %vm534, %v425, 0
          %v560 = vsel %vm534, %v426, 0
          %v563 = vsel %vm534, %v427, 0
          %v566 = vsel %vm534, %v428, 0
          %v569 = vsel %vm534, %v429, 0
          %v572 = vsel %vm534, %v430, 0
          %v575 = vsel %vm534, %v431, 0
          %v578 = vsel %vm534, %v432, 0
          %v581 = vsel %vm534, %v433, 0
          %583 = vmatprep.subr.mxu0 0.0
          %584 = vmatpush1.msra.mxu0 %v434
          %585 = vmatprep.subr.mxu0 0.0
          %586 = vmatpush1.msra.mxu0 %v435
          %587 = vmatprep.subr.mxu0 0.0
          %588 = vmatpush1.msra.mxu0 %v436
          %589 = vmatprep.subr.mxu0 0.0
          %590 = vmatpush1.msra.mxu0 %v437
          %591 = vmatprep.subr.mxu0 0.0
          %592 = vmatpush1.msra.mxu0 0.0
          %593 = vmatprep.subr.mxu0 0.0
          %594 = vmatpush1.msra.mxu0 0.0
          %595 = vmatprep.subr.mxu0 0.0
          %596 = vmatpush1.msra.mxu0 0.0
          %597 = vmatprep.subr.mxu0 0.0
          %598 = vmatpush1.msra.mxu0 0.0
          %599 = vmatprep.subr.mxu0 0.0
          %600 = vmatpush1.msra.mxu0 0.0
          %601 = vmatprep.subr.mxu0 0.0
          %602 = vmatpush1.msra.mxu0 0.0
          %603 = vmatprep.subr.mxu0 0.0
          %604 = vmatpush1.msra.mxu0 0.0
          %605 = vmatprep.subr.mxu0 0.0
          %606 = vmatpush1.msra.mxu0 0.0
          %607 = vmatprep.subr.mxu0 0.0
          %608 = vmatpush1.msra.mxu0 0.0
          %609 = vmatprep.subr.mxu0 0.0
          %610 = vmatpush1.msra.mxu0 0.0
          %611 = vmatprep.subr.mxu0 0.0
          %612 = vmatpush1.msra.mxu0 0.0
          %613 = vmatprep.subr.mxu0 0.0
          %614 = vmatpush1.msra.mxu0 0.0
          %615 = vmatprep.subr.mxu0 0.0
          %616 = vmatpush1.msra.mxu0 0.0
          %617 = vmatprep.subr.mxu0 0.0
          %618 = vmatpush1.msra.mxu0 0.0
          %619 = vmatprep.subr.mxu0 0.0
          %620 = vmatpush1.msra.mxu0 0.0
          %621 = vmatprep.subr.mxu0 0.0
          %622 = vmatpush1.msra.mxu0 0.0
          %623 = vmatprep.subr.mxu0 0.0
          %624 = vmatpush1.msra.mxu0 0.0
          %625 = vmatprep.subr.mxu0 0.0
          %626 = vmatpush1.msra.mxu0 0.0
          %627 = vmatprep.subr.mxu0 0.0
          %628 = vmatpush1.msra.mxu0 0.0
          %629 = vmatprep.subr.mxu0 0.0
          %630 = vmatpush1.msra.mxu0 0.0
          %631 = vmatprep.subr.mxu0 0.0
          %632 = vmatpush1.msra.mxu0 0.0
          %633 = vmatprep.subr.mxu0 0.0
          %634 = vmatpush1.msra.mxu0 0.0
          %635 = vmatprep.subr.mxu0 0.0
          %636 = vmatpush1.msra.mxu0 0.0
          %637 = vmatprep.subr.mxu0 0.0
          %638 = vmatpush1.msra.mxu0 0.0
          %639 = vmatprep.subr.mxu0 0.0
          %640 = vmatpush1.msra.mxu0 0.0
          %641 = vmatprep.subr.mxu0 0.0
          %642 = vmatpush1.msra.mxu0 0.0
          %643 = vmatprep.subr.mxu0 0.0
          %644 = vmatpush1.msra.mxu0 0.0
          %645 = vmatprep.subr.mxu0 0.0
          %646 = vmatpush1.msra.mxu0 0.0
          %647 = vmatprep.mubr.f32.mxu0 0.0
          %648 = vmatmul.mubr.f32.gmra.mrb[0].mxu0 %v536
          %v649 = vpop.f32.mrb[0].mxu0
          %v650 = vadd.f32 %v457, %v649
          %v651 = vpop.f32.mrb[0].mxu0
          %652 = vmatprep.mubr.f32.mxu0 0.0
          %653 = vmatmul.mubr.f32.gmra.mrb[0].mxu0 %v539
          %v654 = vpop.f32.mrb[0].mxu0
          %v655 = vadd.f32 %v462, %v654
          %v656 = vpop.f32.mrb[0].mxu0
          %657 = vmatprep.mubr.f32.mxu0 0.0
          %658 = vmatmul.mubr.f32.gmra.mrb[0].mxu0 %v542
          %v659 = vpop.f32.mrb[0].mxu0
          %v660 = vadd.f32 %v467, %v659
          %v661 = vpop.f32.mrb[0].mxu0
          %662 = vmatprep.mubr.f32.mxu0 0.0
          %663 = vmatmul.mubr.f32.gmra.mrb[0].mxu0 %v545
          %v664 = vpop.f32.mrb[0].mxu0
          %v665 = vadd.f32 %v472, %v664
          %v666 = vpop.f32.mrb[0].mxu0
          %667 = vmatprep.mubr.f32.mxu0 0.0
          %668 = vmatmul.mubr.f32.gmra.mrb[0].mxu0 %v548
          %v669 = vpop.f32.mrb[0].mxu0
          %v670 = vadd.f32 %v477, %v669
          %v671 = vpop.f32.mrb[0].mxu0
          %672 = vmatprep.mubr.f32.mxu0 0.0
          %673 = vmatmul.mubr.f32.gmra.mrb[0].mxu0 %v551
          %v674 = vpop.f32.mrb[0].mxu0
          %v675 = vadd.f32 %v482, %v674
          %v676 = vpop.f32.mrb[0].mxu0
          %677 = vmatprep.mubr.f32.mxu0 0.0
          %678 = vmatmul.mubr.f32.gmra.mrb[0].mxu0 %v554
          %v679 = vpop.f32.mrb[0].mxu0
          %v680 = vadd.f32 %v487, %v679
          %v681 = vpop.f32.mrb[0].mxu0
          %682 = vmatprep.mubr.f32.mxu0 0.0
          %683 = vmatmul.mubr.f32.gmra.mrb[0].mxu0 %v557
          %v684 = vpop.f32.mrb[0].mxu0
          %v685 = vadd.f32 %v492, %v684
          %v686 = vpop.f32.mrb[0].mxu0
          %687 = vmatprep.mubr.f32.mxu0 0.0
          %688 = vmatmul.mubr.f32.gmra.mrb[0].mxu0 %v560
          %v689 = vpop.f32.mrb[0].mxu0
          %v690 = vadd.f32 %v497, %v689
          %v691 = vpop.f32.mrb[0].mxu0
          %692 = vmatprep.mubr.f32.mxu0 0.0
          %693 = vmatmul.mubr.f32.gmra.mrb[0].mxu0 %v563
          %v694 = vpop.f32.mrb[0].mxu0
          %v695 = vadd.f32 %v502, %v694
          %v696 = vpop.f32.mrb[0].mxu0
          %697 = vmatprep.mubr.f32.mxu0 0.0
          %698 = vmatmul.mubr.f32.gmra.mrb[0].mxu0 %v566
          %v699 = vpop.f32.mrb[0].mxu0
          %v700 = vadd.f32 %v507, %v699
          %v701 = vpop.f32.mrb[0].mxu0
          %702 = vmatprep.mubr.f32.mxu0 0.0
          %703 = vmatmul.mubr.f32.gmra.mrb[0].mxu0 %v569
          %v704 = vpop.f32.mrb[0].mxu0
          %v705 = vadd.f32 %v512, %v704
          %v706 = vpop.f32.mrb[0].mxu0
          %707 = vmatprep.mubr.f32.mxu0 0.0
          %708 = vmatmul.mubr.f32.gmra.mrb[0].mxu0 %v572
          %v709 = vpop.f32.mrb[0].mxu0
          %v710 = vadd.f32 %v517, %v709
          %v711 = vpop.f32.mrb[0].mxu0
          %712 = vmatprep.mubr.f32.mxu0 0.0
          %713 = vmatmul.mubr.f32.gmra.mrb[0].mxu0 %v575
          %v714 = vpop.f32.mrb[0].mxu0
          %v715 = vadd.f32 %v522, %v714
          %v716 = vpop.f32.mrb[0].mxu0
          %717 = vmatprep.mubr.f32.mxu0 0.0
          %718 = vmatmul.mubr.f32.gmra.mrb[0].mxu0 %v578
          %v719 = vpop.f32.mrb[0].mxu0
          %v720 = vadd.f32 %v527, %v719
          %v721 = vpop.f32.mrb[0].mxu0
          %722 = vmatprep.mubr.f32.mxu0 0.0
          %723 = vmatmul.mubr.f32.gmra.mrb[0].mxu0 %v581
          %v724 = vpop.f32.mrb[0].mxu0
          %v725 = vadd.f32 %v532, %v724
          %v726 = vpop.f32.mrb[0].mxu0
          %727 = vdwg.mxu0
          %vm728 = vcmask 64512
          %729 = vst.msk [vmem:[#allocation2] sm:$0xff] %vm728, %v650
          %730 = vst.msk [vmem:[#allocation2 + $0x8] sm:$0xff] %vm728, %v655
          %731 = vst.msk [vmem:[#allocation2 + $0x10] sm:$0xff] %vm728, %v660
          %732 = vst.msk [vmem:[#allocation2 + $0x18] sm:$0xff] %vm728, %v665
          %733 = vst.msk [vmem:[#allocation2 + $0x20] sm:$0xff] %vm728, %v670
          %734 = vst.msk [vmem:[#allocation2 + $0x28] sm:$0xff] %vm728, %v675
          %735 = vst.msk [vmem:[#allocation2 + $0x30] sm:$0xff] %vm728, %v680
          %736 = vst.msk [vmem:[#allocation2 + $0x38] sm:$0xff] %vm728, %v685
          %737 = vst.msk [vmem:[#allocation2 + $0x40] sm:$0xff] %vm728, %v690
          %738 = vst.msk [vmem:[#allocation2 + $0x48] sm:$0xff] %vm728, %v695
          %739 = vst.msk [vmem:[#allocation2 + $0x50] sm:$0xff] %vm728, %v700
          %740 = vst.msk [vmem:[#allocation2 + $0x58] sm:$0xff] %vm728, %v705
          %741 = vst.msk [vmem:[#allocation2 + $0x60] sm:$0xff] %vm728, %v710
          %742 = vst.msk [vmem:[#allocation2 + $0x68] sm:$0xff] %vm728, %v715
          %743 = vst.msk [vmem:[#allocation2 + $0x70] sm:$0xff] %vm728, %v720
          %744 = vst.msk [vmem:[#allocation2 + $0x78] sm:$0xff] %vm728, %v725
        $region56: #{tpu_custom_call.1} parent=47 // pred_fallthru
          _
        %v745 = vld [vmem:[%s386] sm:$0xff]
        %v746 = vld [vmem:[%s386 + $0x8] sm:$0xff]
        %v747 = vld [vmem:[%s390] sm:$0x1]
        %749 = vset.pattern.permute.xlu0 0
        %750 = vperm.xlu0 %749, %v745
        %v751 = vpop.permute.xlu0 %750
        %754 = vset.pattern.permute.xlu0 0
        %755 = vperm.xlu0 %754, %v746
        %v756 = vpop.permute.xlu0 %755
        %v759 = vlaneseq
        %v760 = vshrl.u32 %v759, 7
        %v761 = vsub.s32 0, %v760
        %v762 = vrot.slane %v747, %v761
        %v764 = vsub.f32 %v751, %v762
        %v765 = vsub.f32 %v756, %v762
        %v766 = vmul.f32 %v764, %v764
        %v767 = vmul.f32 %v765, %v765
        %v768 = vsub.f32 0.0, %v766
        %v769 = vsub.f32 0.0, %v767
        %vm770 = vcmask 64512
        %v771 = vsel %vm770, %v768, -inf
        %772 = vmax.xlane.f32.xlu0 %v771
        %v773 = vpop.xlane.xlu0 %772
        %v774 = vsel %vm770, %v769, -inf
        %775 = vmax.xlane.f32.xlu0 %v774
        %v776 = vpop.xlane.xlu0 %775
        %v777 = vsub.f32 %v768, %v773
        %v778 = vsub.f32 %v769, %v776
        %s779 = sld [smem:[#allocation3]]
        %v780 = vstv %s779
        %v781 = vmul.f32 %v780, %v777
        %v782 = vmul.f32 %v780, %v778
        %v783 = vmul.f32 %v781, 1.442695
        %v784 = vpow.pop %v783
        %v785 = vmul.f32 %v782, 1.442695
        %v786 = vpow.pop %v785
        %v787 = vsel %vm770, %v784, 0.0
        %788 = vadd.xlane.f32.xlu0 %v787
        %v789 = vpop.xlane.xlu0 %788
        %v790 = vsel %vm770, %v786, 0.0
        %791 = vadd.xlane.f32.xlu0 %v790
        %v792 = vpop.xlane.xlu0 %791
        %v793 = vrcp.pop %v789
        %v794 = vmul.f32 1.0, %v793
        %v795 = vrcp.pop %v792
        %v796 = vmul.f32 1.0, %v795
        %v797 = vmul.f32 %v784, %v794
        %v798 = vmul.f32 %v786, %v796
        %799 = vst.msk [vmem:[%s412] sm:$0xff] %vm770, %v797
        %800 = vst.msk [vmem:[%s412 + $0x8] sm:$0xff] %vm770, %v798
        %v801 = vld [vmem:[#allocation2] sm:$0xff]
        %v802 = vld [vmem:[#allocation2 + $0x8] sm:$0xff]
        %v803 = vld [vmem:[#allocation2 + $0x10] sm:$0xff]
        %v804 = vld [vmem:[#allocation2 + $0x18] sm:$0xff]
        %s805 = sld [smem:[#allocation3 + $0x1]]
        %v806 = vstv %s805
        %v807 = vmul.f32 %v806, %v777
        %v808 = vmul.f32 %v806, %v778
        %v809 = vmul.f32 %v807, 1.442695
        %v810 = vpow.pop %v809
        %v811 = vmul.f32 %v808, 1.442695
        %v812 = vpow.pop %v811
        %v813 = vsel %vm770, %v810, 0.0
        %814 = vadd.xlane.f32.xlu0 %v813
        %v815 = vpop.xlane.xlu0 %814
        %v816 = vsel %vm770, %v812, 0.0
        %817 = vadd.xlane.f32.xlu0 %v816
        %v818 = vpop.xlane.xlu0 %817
        %v819 = vrcp.pop %v815
        %v820 = vmul.f32 1.0, %v819
        %v821 = vrcp.pop %v818
        %v822 = vmul.f32 1.0, %v821
        %v823 = vmul.f32 %v810, %v820
        %v824 = vmul.f32 %v812, %v822
        %s825 = scalar_lea.vmem %s412, 16
        %826 = vst.msk [vmem:[%s825] sm:$0xff] %vm770, %v823
        %827 = vst.msk [vmem:[%s825 + $0x8] sm:$0xff] %vm770, %v824
        %v828 = vld [vmem:[#allocation2 + $0x20] sm:$0xff]
        %v829 = vld [vmem:[#allocation2 + $0x28] sm:$0xff]
        %v830 = vld [vmem:[#allocation2 + $0x30] sm:$0xff]
        %v831 = vld [vmem:[#allocation2 + $0x38] sm:$0xff]
        %v833 = vsel %vm770, %v828, 0
        %v836 = vsel %vm770, %v829, 0
        %v839 = vsel %vm770, %v830, 0
        %v842 = vsel %vm770, %v831, 0
        %v845 = vsel %vm770, %v823, 0
        %v848 = vsel %vm770, %v824, 0
        %850 = vmatprep.subr.mxu0 0.0
        %851 = vmatpush1.xpose.msra.mxu0 %v845
        %852 = vmatprep.subr.mxu0 0.0
        %853 = vmatpush1.xpose.msra.mxu0 %v848
        %854 = vmatprep.subr.mxu0 0.0
        %855 = vmatpush1.xpose.msra.mxu0 0.0
        %856 = vmatprep.subr.mxu0 0.0
        %857 = vmatpush1.xpose.msra.mxu0 0.0
        %858 = vmatprep.subr.mxu0 0.0
        %859 = vmatpush1.xpose.msra.mxu0 0.0
        %860 = vmatprep.subr.mxu0 0.0
        %861 = vmatpush1.xpose.msra.mxu0 0.0
        %862 = vmatprep.subr.mxu0 0.0
        %863 = vmatpush1.xpose.msra.mxu0 0.0
        %864 = vmatprep.subr.mxu0 0.0
        %865 = vmatpush1.xpose.msra.mxu0 0.0
        %866 = vmatprep.subr.mxu0 0.0
        %867 = vmatpush1.xpose.msra.mxu0 0.0
        %868 = vmatprep.subr.mxu0 0.0
        %869 = vmatpush1.xpose.msra.mxu0 0.0
        %870 = vmatprep.subr.mxu0 0.0
        %871 = vmatpush1.xpose.msra.mxu0 0.0
        %872 = vmatprep.subr.mxu0 0.0
        %873 = vmatpush1.xpose.msra.mxu0 0.0
        %874 = vmatprep.subr.mxu0 0.0
        %875 = vmatpush1.xpose.msra.mxu0 0.0
        %876 = vmatprep.subr.mxu0 0.0
        %877 = vmatpush1.xpose.msra.mxu0 0.0
        %878 = vmatprep.subr.mxu0 0.0
        %879 = vmatpush1.xpose.msra.mxu0 0.0
        %880 = vmatprep.subr.mxu0 0.0
        %881 = vmatpush1.xpose.msra.mxu0 0.0
        %882 = vmatprep.subr.mxu0 0.0
        %883 = vmatpush1.xpose.msra.mxu0 0.0
        %884 = vmatprep.subr.mxu0 0.0
        %885 = vmatpush1.xpose.msra.mxu0 0.0
        %886 = vmatprep.subr.mxu0 0.0
        %887 = vmatpush1.xpose.msra.mxu0 0.0
        %888 = vmatprep.subr.mxu0 0.0
        %889 = vmatpush1.xpose.msra.mxu0 0.0
        %890 = vmatprep.subr.mxu0 0.0
        %891 = vmatpush1.xpose.msra.mxu0 0.0
        %892 = vmatprep.subr.mxu0 0.0
        %893 = vmatpush1.xpose.msra.mxu0 0.0
        %894 = vmatprep.subr.mxu0 0.0
        %895 = vmatpush1.xpose.msra.mxu0 0.0
        %896 = vmatprep.subr.mxu0 0.0
        %897 = vmatpush1.xpose.msra.mxu0 0.0
        %898 = vmatprep.subr.mxu0 0.0
        %899 = vmatpush1.xpose.msra.mxu0 0.0
        %900 = vmatprep.subr.mxu0 0.0
        %901 = vmatpush1.xpose.msra.mxu0 0.0
        %902 = vmatprep.subr.mxu0 0.0
        %903 = vmatpush1.xpose.msra.mxu0 0.0
        %904 = vmatprep.subr.mxu0 0.0
        %905 = vmatpush1.xpose.msra.mxu0 0.0
        %906 = vmatprep.subr.mxu0 0.0
        %907 = vmatpush1.xpose.msra.mxu0 0.0
        %908 = vmatprep.subr.mxu0 0.0
        %909 = vmatpush1.xpose.msra.mxu0 0.0
        %910 = vmatprep.subr.mxu0 0.0
        %911 = vmatpush1.xpose.msra.mxu0 0.0
        %912 = vmatprep.subr.mxu0 0.0
        %913 = vmatpush1.xpose.msra.mxu0 0.0
        %914 = vmatprep.mubr.f32.mxu0 0.0
        %915 = vmatmul.mubr.f32.gmra.mrb[0].mxu0 %v833
        %v916 = vpop.f32.mrb[0].mxu0
        %v917 = vadd.f32 0.0, %v916
        %v918 = vpop.f32.mrb[0].mxu0
        %919 = vmatprep.mubr.f32.mxu0 0.0
        %920 = vmatmul.mubr.f32.gmra.mrb[0].mxu0 %v836
        %v921 = vpop.f32.mrb[0].mxu0
        %v922 = vadd.f32 0.0, %v921
        %v923 = vpop.f32.mrb[0].mxu0
        %924 = vmatprep.mubr.f32.mxu0 0.0
        %925 = vmatmul.mubr.f32.gmra.mrb[0].mxu0 %v839
        %v926 = vpop.f32.mrb[0].mxu0
        %v927 = vadd.f32 0.0, %v926
        %v928 = vpop.f32.mrb[0].mxu0
        %929 = vmatprep.mubr.f32.mxu0 0.0
        %930 = vmatmul.mubr.f32.gmra.mrb[0].mxu0 %v842
        %v931 = vpop.f32.mrb[0].mxu0
        %v932 = vadd.f32 0.0, %v931
        %v933 = vpop.f32.mrb[0].mxu0
        %934 = vdwg.mxu0
        %v936 = vsel %vm770, %v801, 0
        %v939 = vsel %vm770, %v802, 0
        %v942 = vsel %vm770, %v803, 0
        %v945 = vsel %vm770, %v804, 0
        %v948 = vsel %vm770, %v797, 0
        %v951 = vsel %vm770, %v798, 0
        %953 = vmatprep.subr.mxu0 0.0
        %954 = vmatpush1.xpose.msra.mxu0 %v948
        %955 = vmatprep.subr.mxu0 0.0
        %956 = vmatpush1.xpose.msra.mxu0 %v951
        %957 = vmatprep.subr.mxu0 0.0
        %958 = vmatpush1.xpose.msra.mxu0 0.0
        %959 = vmatprep.subr.mxu0 0.0
        %960 = vmatpush1.xpose.msra.mxu0 0.0
        %961 = vmatprep.subr.mxu0 0.0
        %962 = vmatpush1.xpose.msra.mxu0 0.0
        %963 = vmatprep.subr.mxu0 0.0
        %964 = vmatpush1.xpose.msra.mxu0 0.0
        %965 = vmatprep.subr.mxu0 0.0
        %966 = vmatpush1.xpose.msra.mxu0 0.0
        %967 = vmatprep.subr.mxu0 0.0
        %968 = vmatpush1.xpose.msra.mxu0 0.0
        %969 = vmatprep.subr.mxu0 0.0
        %970 = vmatpush1.xpose.msra.mxu0 0.0
        %971 = vmatprep.subr.mxu0 0.0
        %972 = vmatpush1.xpose.msra.mxu0 0.0
        %973 = vmatprep.subr.mxu0 0.0
        %974 = vmatpush1.xpose.msra.mxu0 0.0
        %975 = vmatprep.subr.mxu0 0.0
        %976 = vmatpush1.xpose.msra.mxu0 0.0
        %977 = vmatprep.subr.mxu0 0.0
        %978 = vmatpush1.xpose.msra.mxu0 0.0
        %979 = vmatprep.subr.mxu0 0.0
        %980 = vmatpush1.xpose.msra.mxu0 0.0
        %981 = vmatprep.subr.mxu0 0.0
        %982 = vmatpush1.xpose.msra.mxu0 0.0
        %983 = vmatprep.subr.mxu0 0.0
        %984 = vmatpush1.xpose.msra.mxu0 0.0
        %985 = vmatprep.subr.mxu0 0.0
        %986 = vmatpush1.xpose.msra.mxu0 0.0
        %987 = vmatprep.subr.mxu0 0.0
        %988 = vmatpush1.xpose.msra.mxu0 0.0
        %989 = vmatprep.subr.mxu0 0.0
        %990 = vmatpush1.xpose.msra.mxu0 0.0
        %991 = vmatprep.subr.mxu0 0.0
        %992 = vmatpush1.xpose.msra.mxu0 0.0
        %993 = vmatprep.subr.mxu0 0.0
        %994 = vmatpush1.xpose.msra.mxu0 0.0
        %995 = vmatprep.subr.mxu0 0.0
        %996 = vmatpush1.xpose.msra.mxu0 0.0
        %997 = vmatprep.subr.mxu0 0.0
        %998 = vmatpush1.xpose.msra.mxu0 0.0
        %999 = vmatprep.subr.mxu0 0.0
        %1000 = vmatpush1.xpose.msra.mxu0 0.0
        %1001 = vmatprep.subr.mxu0 0.0
        %1002 = vmatpush1.xpose.msra.mxu0 0.0
        %1003 = vmatprep.subr.mxu0 0.0
        %1004 = vmatpush1.xpose.msra.mxu0 0.0
        %1005 = vmatprep.subr.mxu0 0.0
        %1006 = vmatpush1.xpose.msra.mxu0 0.0
        %1007 = vmatprep.subr.mxu0 0.0
        %1008 = vmatpush1.xpose.msra.mxu0 0.0
        %1009 = vmatprep.subr.mxu0 0.0
        %1010 = vmatpush1.xpose.msra.mxu0 0.0
        %1011 = vmatprep.subr.mxu0 0.0
        %1012 = vmatpush1.xpose.msra.mxu0 0.0
        %1013 = vmatprep.subr.mxu0 0.0
        %1014 = vmatpush1.xpose.msra.mxu0 0.0
        %1015 = vmatprep.subr.mxu0 0.0
        %1016 = vmatpush1.xpose.msra.mxu0 0.0
        %1017 = vmatprep.mubr.f32.mxu0 0.0
        %1018 = vmatmul.mubr.f32.gmra.mrb[0].mxu0 %v936
        %v1019 = vpop.f32.mrb[0].mxu0
        %v1020 = vadd.f32 %v917, %v1019
        %v1021 = vpop.f32.mrb[0].mxu0
        %1022 = vmatprep.mubr.f32.mxu0 0.0
        %1023 = vmatmul.mubr.f32.gmra.mrb[0].mxu0 %v939
        %v1024 = vpop.f32.mrb[0].mxu0
        %v1025 = vadd.f32 %v922, %v1024
        %v1026 = vpop.f32.mrb[0].mxu0
        %1027 = vmatprep.mubr.f32.mxu0 0.0
        %1028 = vmatmul.mubr.f32.gmra.mrb[0].mxu0 %v942
        %v1029 = vpop.f32.mrb[0].mxu0
        %v1030 = vadd.f32 %v927, %v1029
        %v1031 = vpop.f32.mrb[0].mxu0
        %1032 = vmatprep.mubr.f32.mxu0 0.0
        %1033 = vmatmul.mubr.f32.gmra.mrb[0].mxu0 %v945
        %v1034 = vpop.f32.mrb[0].mxu0
        %v1035 = vadd.f32 %v932, %v1034
        %v1036 = vpop.f32.mrb[0].mxu0
        %1037 = vdwg.mxu0
        %s1038 = sld [smem:[#allocation3 + $0x2]]
        %v1039 = vstv %s1038
        %v1040 = vmul.f32 %v1039, %v777
        %v1041 = vmul.f32 %v1039, %v778
        %v1042 = vmul.f32 %v1040, 1.442695
        %v1043 = vpow.pop %v1042
        %v1044 = vmul.f32 %v1041, 1.442695
        %v1045 = vpow.pop %v1044
        %v1046 = vsel %vm770, %v1043, 0.0
        %1047 = vadd.xlane.f32.xlu0 %v1046
        %v1048 = vpop.xlane.xlu0 %1047
        %v1049 = vsel %vm770, %v1045, 0.0
        %1050 = vadd.xlane.f32.xlu0 %v1049
        %v1051 = vpop.xlane.xlu0 %1050
        %v1052 = vrcp.pop %v1048
        %v1053 = vmul.f32 1.0, %v1052
        %v1054 = vrcp.pop %v1051
        %v1055 = vmul.f32 1.0, %v1054
        %v1056 = vmul.f32 %v1043, %v1053
        %v1057 = vmul.f32 %v1045, %v1055
        %s1058 = scalar_lea.vmem %s412, 32
        %1059 = vst.msk [vmem:[%s1058] sm:$0xff] %vm770, %v1056
        %1060 = vst.msk [vmem:[%s1058 + $0x8] sm:$0xff] %vm770, %v1057
        %v1061 = vld [vmem:[#allocation2 + $0x40] sm:$0xff]
        %v1062 = vld [vmem:[#allocation2 + $0x48] sm:$0xff]
        %v1063 = vld [vmem:[#allocation2 + $0x50] sm:$0xff]
        %v1064 = vld [vmem:[#allocation2 + $0x58] sm:$0xff]
        %v1066 = vsel %vm770, %v1061, 0
        %v1069 = vsel %vm770, %v1062, 0
        %v1072 = vsel %vm770, %v1063, 0
        %v1075 = vsel %vm770, %v1064, 0
        %v1078 = vsel %vm770, %v1056, 0
        %v1081 = vsel %vm770, %v1057, 0
        %1083 = vmatprep.subr.mxu0 0.0
        %1084 = vmatpush1.xpose.msra.mxu0 %v1078
        %1085 = vmatprep.subr.mxu0 0.0
        %1086 = vmatpush1.xpose.msra.mxu0 %v1081
        %1087 = vmatprep.subr.mxu0 0.0
        %1088 = vmatpush1.xpose.msra.mxu0 0.0
        %1089 = vmatprep.subr.mxu0 0.0
        %1090 = vmatpush1.xpose.msra.mxu0 0.0
        %1091 = vmatprep.subr.mxu0 0.0
        %1092 = vmatpush1.xpose.msra.mxu0 0.0
        %1093 = vmatprep.subr.mxu0 0.0
        %1094 = vmatpush1.xpose.msra.mxu0 0.0
        %1095 = vmatprep.subr.mxu0 0.0
        %1096 = vmatpush1.xpose.msra.mxu0 0.0
        %1097 = vmatprep.subr.mxu0 0.0
        %1098 = vmatpush1.xpose.msra.mxu0 0.0
        %1099 = vmatprep.subr.mxu0 0.0
        %1100 = vmatpush1.xpose.msra.mxu0 0.0
        %1101 = vmatprep.subr.mxu0 0.0
        %1102 = vmatpush1.xpose.msra.mxu0 0.0
        %1103 = vmatprep.subr.mxu0 0.0
        %1104 = vmatpush1.xpose.msra.mxu0 0.0
        %1105 = vmatprep.subr.mxu0 0.0
        %1106 = vmatpush1.xpose.msra.mxu0 0.0
        %1107 = vmatprep.subr.mxu0 0.0
        %1108 = vmatpush1.xpose.msra.mxu0 0.0
        %1109 = vmatprep.subr.mxu0 0.0
        %1110 = vmatpush1.xpose.msra.mxu0 0.0
        %1111 = vmatprep.subr.mxu0 0.0
        %1112 = vmatpush1.xpose.msra.mxu0 0.0
        %1113 = vmatprep.subr.mxu0 0.0
        %1114 = vmatpush1.xpose.msra.mxu0 0.0
        %1115 = vmatprep.subr.mxu0 0.0
        %1116 = vmatpush1.xpose.msra.mxu0 0.0
        %1117 = vmatprep.subr.mxu0 0.0
        %1118 = vmatpush1.xpose.msra.mxu0 0.0
        %1119 = vmatprep.subr.mxu0 0.0
        %1120 = vmatpush1.xpose.msra.mxu0 0.0
        %1121 = vmatprep.subr.mxu0 0.0
        %1122 = vmatpush1.xpose.msra.mxu0 0.0
        %1123 = vmatprep.subr.mxu0 0.0
        %1124 = vmatpush1.xpose.msra.mxu0 0.0
        %1125 = vmatprep.subr.mxu0 0.0
        %1126 = vmatpush1.xpose.msra.mxu0 0.0
        %1127 = vmatprep.subr.mxu0 0.0
        %1128 = vmatpush1.xpose.msra.mxu0 0.0
        %1129 = vmatprep.subr.mxu0 0.0
        %1130 = vmatpush1.xpose.msra.mxu0 0.0
        %1131 = vmatprep.subr.mxu0 0.0
        %1132 = vmatpush1.xpose.msra.mxu0 0.0
        %1133 = vmatprep.subr.mxu0 0.0
        %1134 = vmatpush1.xpose.msra.mxu0 0.0
        %1135 = vmatprep.subr.mxu0 0.0
        %1136 = vmatpush1.xpose.msra.mxu0 0.0
        %1137 = vmatprep.subr.mxu0 0.0
        %1138 = vmatpush1.xpose.msra.mxu0 0.0
        %1139 = vmatprep.subr.mxu0 0.0
        %1140 = vmatpush1.xpose.msra.mxu0 0.0
        %1141 = vmatprep.subr.mxu0 0.0
        %1142 = vmatpush1.xpose.msra.mxu0 0.0
        %1143 = vmatprep.subr.mxu0 0.0
        %1144 = vmatpush1.xpose.msra.mxu0 0.0
        %1145 = vmatprep.subr.mxu0 0.0
        %1146 = vmatpush1.xpose.msra.mxu0 0.0
        %1147 = vmatprep.mubr.f32.mxu0 0.0
        %1148 = vmatmul.mubr.f32.gmra.mrb[0].mxu0 %v1066
        %v1149 = vpop.f32.mrb[0].mxu0
        %v1150 = vadd.f32 0.0, %v1149
        %v1151 = vpop.f32.mrb[0].mxu0
        %1152 = vmatprep.mubr.f32.mxu0 0.0
        %1153 = vmatmul.mubr.f32.gmra.mrb[0].mxu0 %v1069
        %v1154 = vpop.f32.mrb[0].mxu0
        %v1155 = vadd.f32 0.0, %v1154
        %v1156 = vpop.f32.mrb[0].mxu0
        %1157 = vmatprep.mubr.f32.mxu0 0.0
        %1158 = vmatmul.mubr.f32.gmra.mrb[0].mxu0 %v1072
        %v1159 = vpop.f32.mrb[0].mxu0
        %v1160 = vadd.f32 0.0, %v1159
        %v1161 = vpop.f32.mrb[0].mxu0
        %1162 = vmatprep.mubr.f32.mxu0 0.0
        %1163 = vmatmul.mubr.f32.gmra.mrb[0].mxu0 %v1075
        %v1164 = vpop.f32.mrb[0].mxu0
        %v1165 = vadd.f32 0.0, %v1164
        %v1166 = vpop.f32.mrb[0].mxu0
        %1167 = vdwg.mxu0
        %v1168 = vadd.f32 %v1020, %v1150
        %v1169 = vadd.f32 %v1025, %v1155
        %v1170 = vadd.f32 %v1030, %v1160
        %v1171 = vadd.f32 %v1035, %v1165
        %s1172 = sld [smem:[#allocation3 + $0x3]]
        %v1173 = vstv %s1172
        %v1174 = vmul.f32 %v1173, %v777
        %v1175 = vmul.f32 %v1173, %v778
        %v1176 = vmul.f32 %v1174, 1.442695
        %v1177 = vpow.pop %v1176
        %v1178 = vmul.f32 %v1175, 1.442695
        %v1179 = vpow.pop %v1178
        %v1180 = vsel %vm770, %v1177, 0.0
        %1181 = vadd.xlane.f32.xlu0 %v1180
        %v1182 = vpop.xlane.xlu0 %1181
        %v1183 = vsel %vm770, %v1179, 0.0
        %1184 = vadd.xlane.f32.xlu0 %v1183
        %v1185 = vpop.xlane.xlu0 %1184
        %v1186 = vrcp.pop %v1182
        %v1187 = vmul.f32 1.0, %v1186
        %v1188 = vrcp.pop %v1185
        %v1189 = vmul.f32 1.0, %v1188
        %v1190 = vmul.f32 %v1177, %v1187
        %v1191 = vmul.f32 %v1179, %v1189
        %s1192 = scalar_lea.vmem %s412, 48
        %1193 = vst.msk [vmem:[%s1192] sm:$0xff] %vm770, %v1190
        %1194 = vst.msk [vmem:[%s1192 + $0x8] sm:$0xff] %vm770, %v1191
        %v1195 = vld [vmem:[#allocation2 + $0x60] sm:$0xff]
        %v1196 = vld [vmem:[#allocation2 + $0x68] sm:$0xff]
        %v1197 = vld [vmem:[#allocation2 + $0x70] sm:$0xff]
        %v1198 = vld [vmem:[#allocation2 + $0x78] sm:$0xff]
        %v1200 = vsel %vm770, %v1195, 0
        %v1203 = vsel %vm770, %v1196, 0
        %v1206 = vsel %vm770, %v1197, 0
        %v1209 = vsel %vm770, %v1198, 0
        %v1212 = vsel %vm770, %v1190, 0
        %v1215 = vsel %vm770, %v1191, 0
        %1217 = vmatprep.subr.mxu0 0.0
        %1218 = vmatpush1.xpose.msra.mxu0 %v1212
        %1219 = vmatprep.subr.mxu0 0.0
        %1220 = vmatpush1.xpose.msra.mxu0 %v1215
        %1221 = vmatprep.subr.mxu0 0.0
        %1222 = vmatpush1.xpose.msra.mxu0 0.0
        %1223 = vmatprep.subr.mxu0 0.0
        %1224 = vmatpush1.xpose.msra.mxu0 0.0
        %1225 = vmatprep.subr.mxu0 0.0
        %1226 = vmatpush1.xpose.msra.mxu0 0.0
        %1227 = vmatprep.subr.mxu0 0.0
        %1228 = vmatpush1.xpose.msra.mxu0 0.0
        %1229 = vmatprep.subr.mxu0 0.0
        %1230 = vmatpush1.xpose.msra.mxu0 0.0
        %1231 = vmatprep.subr.mxu0 0.0
        %1232 = vmatpush1.xpose.msra.mxu0 0.0
        %1233 = vmatprep.subr.mxu0 0.0
        %1234 = vmatpush1.xpose.msra.mxu0 0.0
        %1235 = vmatprep.subr.mxu0 0.0
        %1236 = vmatpush1.xpose.msra.mxu0 0.0
        %1237 = vmatprep.subr.mxu0 0.0
        %1238 = vmatpush1.xpose.msra.mxu0 0.0
        %1239 = vmatprep.subr.mxu0 0.0
        %1240 = vmatpush1.xpose.msra.mxu0 0.0
        %1241 = vmatprep.subr.mxu0 0.0
        %1242 = vmatpush1.xpose.msra.mxu0 0.0
        %1243 = vmatprep.subr.mxu0 0.0
        %1244 = vmatpush1.xpose.msra.mxu0 0.0
        %1245 = vmatprep.subr.mxu0 0.0
        %1246 = vmatpush1.xpose.msra.mxu0 0.0
        %1247 = vmatprep.subr.mxu0 0.0
        %1248 = vmatpush1.xpose.msra.mxu0 0.0
        %1249 = vmatprep.subr.mxu0 0.0
        %1250 = vmatpush1.xpose.msra.mxu0 0.0
        %1251 = vmatprep.subr.mxu0 0.0
        %1252 = vmatpush1.xpose.msra.mxu0 0.0
        %1253 = vmatprep.subr.mxu0 0.0
        %1254 = vmatpush1.xpose.msra.mxu0 0.0
        %1255 = vmatprep.subr.mxu0 0.0
        %1256 = vmatpush1.xpose.msra.mxu0 0.0
        %1257 = vmatprep.subr.mxu0 0.0
        %1258 = vmatpush1.xpose.msra.mxu0 0.0
        %1259 = vmatprep.subr.mxu0 0.0
        %1260 = vmatpush1.xpose.msra.mxu0 0.0
        %1261 = vmatprep.subr.mxu0 0.0
        %1262 = vmatpush1.xpose.msra.mxu0 0.0
        %1263 = vmatprep.subr.mxu0 0.0
        %1264 = vmatpush1.xpose.msra.mxu0 0.0
        %1265 = vmatprep.subr.mxu0 0.0
        %1266 = vmatpush1.xpose.msra.mxu0 0.0
        %1267 = vmatprep.subr.mxu0 0.0
        %1268 = vmatpush1.xpose.msra.mxu0 0.0
        %1269 = vmatprep.subr.mxu0 0.0
        %1270 = vmatpush1.xpose.msra.mxu0 0.0
        %1271 = vmatprep.subr.mxu0 0.0
        %1272 = vmatpush1.xpose.msra.mxu0 0.0
        %1273 = vmatprep.subr.mxu0 0.0
        %1274 = vmatpush1.xpose.msra.mxu0 0.0
        %1275 = vmatprep.subr.mxu0 0.0
        %1276 = vmatpush1.xpose.msra.mxu0 0.0
        %1277 = vmatprep.subr.mxu0 0.0
        %1278 = vmatpush1.xpose.msra.mxu0 0.0
        %1279 = vmatprep.subr.mxu0 0.0
        %1280 = vmatpush1.xpose.msra.mxu0 0.0
        %1281 = vmatprep.mubr.f32.mxu0 0.0
        %1282 = vmatmul.mubr.f32.gmra.mrb[0].mxu0 %v1200
        %v1283 = vpop.f32.mrb[0].mxu0
        %v1284 = vadd.f32 0.0, %v1283
        %v1285 = vpop.f32.mrb[0].mxu0
        %1286 = vmatprep.mubr.f32.mxu0 0.0
        %1287 = vmatmul.mubr.f32.gmra.mrb[0].mxu0 %v1203
        %v1288 = vpop.f32.mrb[0].mxu0
        %v1289 = vadd.f32 0.0, %v1288
        %v1290 = vpop.f32.mrb[0].mxu0
        %1291 = vmatprep.mubr.f32.mxu0 0.0
        %1292 = vmatmul.mubr.f32.gmra.mrb[0].mxu0 %v1206
        %v1293 = vpop.f32.mrb[0].mxu0
        %v1294 = vadd.f32 0.0, %v1293
        %v1295 = vpop.f32.mrb[0].mxu0
        %1296 = vmatprep.mubr.f32.mxu0 0.0
        %1297 = vmatmul.mubr.f32.gmra.mrb[0].mxu0 %v1209
        %v1298 = vpop.f32.mrb[0].mxu0
        %v1299 = vadd.f32 0.0, %v1298
        %v1300 = vpop.f32.mrb[0].mxu0
        %1301 = vdwg.mxu0
        %v1302 = vadd.f32 %v1168, %v1284
        %v1303 = vadd.f32 %v1169, %v1289
        %v1304 = vadd.f32 %v1170, %v1294
        %v1305 = vadd.f32 %v1171, %v1299
        %v1306 = vld [vmem:[%s6] sm:$0xff]
        %v1307 = vld [vmem:[%s6 + $0x8] sm:$0xff]
        %v1308 = vld [vmem:[%s6 + $0x10] sm:$0xff]
        %v1309 = vld [vmem:[%s6 + $0x18] sm:$0xff]
        %1311 = vset.pattern.permute.xlu0 0
        %1312 = vperm.xlu0 %1311, %v1306
        %v1313 = vpop.permute.xlu0 %1312
        %1316 = vset.pattern.permute.xlu0 0
        %1317 = vperm.xlu0 %1316, %v1307
        %v1318 = vpop.permute.xlu0 %1317
        %1321 = vset.pattern.permute.xlu0 0
        %1322 = vperm.xlu0 %1321, %v1308
        %v1323 = vpop.permute.xlu0 %1322
        %1326 = vset.pattern.permute.xlu0 0
        %1327 = vperm.xlu0 %1326, %v1309
        %v1328 = vpop.permute.xlu0 %1327
        %v1330 = vadd.f32 %v1302, %v1313
        %v1331 = vadd.f32 %v1303, %v1318
        %v1332 = vadd.f32 %v1304, %v1323
        %v1333 = vadd.f32 %v1305, %v1328
        %vm1334 = vcmask 130048
        %1335 = vst.msk [vmem:[%s403] sm:$0xff] %vm1334, %v1330
        %1336 = vst.msk [vmem:[%s403 + $0x8] sm:$0xff] %vm1334, %v1331
        %1337 = vst.msk [vmem:[%s403 + $0x10] sm:$0xff] %vm1334, %v1332
        %1338 = vst.msk [vmem:[%s403 + $0x18] sm:$0xff] %vm1334, %v1333
        %p1339 = scmp.lt.s32.totalorder %s25, 1
        %s1340 = scalar_select %p1339, %s25, 1
        %p1341 = scmp.lt.s32.totalorder %s26, 0
        %s1342 = scalar_select %p1341, %s26, 0
        %s1343 = smul.addr %s1340, 4
        %s1344 = sadd.s32 %s1342, %s1343
        %s1345 = smul.addr %s1344, 8
        %s1346 = scalar_lea.vmem %s7, %s1345
        %s1347 = smul.u32 2, %s26
        %p1348 = scmp.lt.s32.totalorder %s25, 1
        %s1349 = scalar_select %p1348, %s25, 1
        %p1350 = scmp.lt.s32.totalorder %s1347, 1
        %s1351 = scalar_select %p1350, %s1347, 1
        %s1352 = smul.addr %s1349, 8
        %s1353 = sadd.s32 %s1351, %s1352
        %s1354 = smul.addr %s1353, 8
        %s1355 = scalar_lea.vmem %s8, %s1354
        // Predicated region
        $region57: #{tpu_custom_call.1} parent=47 // pred_check
          %p1356 = pneg %p217
        $region58: #{tpu_custom_call.1} parent=47 // pred_check_branch
          %1358 = sbr.rel (%p1356) target = $region60
        $region59: #{tpu_custom_call.1} parent=47 // pred_region
          _
        $region60: #{tpu_custom_call.1} parent=47 // pred_fallthru
          _
        // Predicated region
        $region61: #{tpu_custom_call.1} parent=47 // pred_check
          %p1359 = pneg %p245
        $region62: #{tpu_custom_call.1} parent=47 // pred_check_branch
          %1361 = sbr.rel (%p1359) target = $region64
        $region63: #{tpu_custom_call.1} parent=47 // pred_region
          %s1362 = smul.u32 2, %s26
        $region64: #{tpu_custom_call.1} parent=47 // pred_fallthru
          _
      $region48: #{tpu_custom_call.1} parent=5 // pred_fallthru
        _
      %p1363 = scmp.le.s32.totalorder 2, %s16
      // Predicated region
      $region65: #{tpu_custom_call.1} parent=5 // pred_check
        %p1364 = pneg %p1363
      $region66: #{tpu_custom_call.1} parent=5 // pred_check_branch
        %1366 = sbr.rel (%p1364) target = $region68
      $region67: #{tpu_custom_call.1} parent=5 // pred_region
        %s1367 = ssub.s32 %s16, 2
        // Predicated region
        $region69: #{tpu_custom_call.1} parent=67 // pred_check
          %p1368 = pneg %p223
        $region70: #{tpu_custom_call.1} parent=67 // pred_check_branch
          %1370 = sbr.rel (%p1368) target = $region72
        $region71: #{tpu_custom_call.1} parent=67 // pred_region
          %p1371 = scmp.lt.s32.totalorder %s27, 1
          %s1372 = scalar_select %p1371, %s27, 1
          %p1373 = scmp.lt.s32.totalorder %s28, 0
          %s1374 = scalar_select %p1373, %s28, 0
          %s1375 = smul.addr %s1372, 4
          %s1376 = sadd.s32 %s1374, %s1375
          %s1377 = smul.addr %s1376, 8
          %s1378 = scalar_lea.vmem %s7, %s1377
        $region72: #{tpu_custom_call.1} parent=67 // pred_fallthru
          _
        // Predicated region
        $region73: #{tpu_custom_call.1} parent=67 // pred_check
          %p1379 = pneg %p251
        $region74: #{tpu_custom_call.1} parent=67 // pred_check_branch
          %1381 = sbr.rel (%p1379) target = $region76
        $region75: #{tpu_custom_call.1} parent=67 // pred_region
          %s1382 = smul.u32 2, %s28
          %p1383 = scmp.lt.s32.totalorder %s27, 1
          %s1384 = scalar_select %p1383, %s27, 1
          %p1385 = scmp.lt.s32.totalorder %s1382, 1
          %s1386 = scalar_select %p1385, %s1382, 1
          %s1387 = smul.addr %s1384, 8
          %s1388 = sadd.s32 %s1386, %s1387
          %s1389 = smul.addr %s1388, 8
          %s1390 = scalar_lea.vmem %s8, %s1389
        $region76: #{tpu_custom_call.1} parent=67 // pred_fallthru
          _
      $region68: #{tpu_custom_call.1} parent=5 // pred_fallthru
        _
    $region6: #{tpu_custom_call.1} parent=1 // loop_footer
      %s20 = sadd.s32 1, %s16
    $region7: #{tpu_custom_call.1} parent=1 // loop_footer_branch
      %15 = sbr.rel target = $region3
    $region8: #{tpu_custom_call.1} parent=1 // loop_exit
      _
    %1391 = vsyncpa [#allocation4], 1
    %s1392 = scalar_lea.sflag [#allocation4], 1
    %1393 = vsyncpa %s1392, 1

</llo_original>
